<compile_context>
chip_gen: v7x
topology: tpu7x:2x2x1
jax: 0.10.0
libtpu: 0.0.40
codegen_flags: <defaults>
</compile_context>

<pallas_src>
import jax
import jax.numpy as jnp
from jax import lax
from jax.experimental import pallas as pl
from jax.experimental.pallas import tpu as pltpu

EPS = 1e-5


def make_residual_block(N, C, H, W):
    NH = N * H
    WC = W * C

    def kernel(x_ref, w_ref, bnp_ref, a_ref, o_ref):
        # lane <-> channel selection matrices (built once, shared by both BNs):
        #   sel[i, c]  = 1 iff i % C == c        (WC, C)   lane -> channel
        #   selT[c, j] = 1 iff j % C == c        (C, WC)   channel -> lane
        sel = (lax.broadcasted_iota(jnp.int32, (WC, C), 0) % C ==
               lax.broadcasted_iota(jnp.int32, (WC, C), 1)).astype(jnp.float32)
        selT = (lax.broadcasted_iota(jnp.int32, (C, WC), 1) % C ==
                lax.broadcasted_iota(jnp.int32, (C, WC), 0)).astype(jnp.float32)

        # Image-boundary masks for the +-1 vertical taps (built once, reused
        # by both convs).
        row = lax.broadcasted_iota(jnp.int32, (NH, 1), 0) % H
        m_up = (row != 0).astype(jnp.float32)        # has an in-image row above
        m_dn = (row != H - 1).astype(jnp.float32)    # has an in-image row below

        # (2,1) row selector used to stack BN stats / scale+shift 2 rows deep
        # without a sublane-unaligned concatenate.
        e0 = (lax.broadcasted_iota(jnp.int32, (2, 1), 0) == 0).astype(jnp.float32)

        bnp = bnp_ref[...]            # (4, C): [gamma1, beta1, gamma2, beta2]
        alpha = a_ref[...]            # (1, 1)  PReLU slope

        def conv3x3(src_bf, idx):
            # 3x3 "same" conv on the slab = 3 full-slab MXU matmuls
            # (bf16 x bf16 -> f32).  ky = 0 / 2 contributions are produced by
            # rolling the f32 result by +-1 rows on the XLU and masking rows
            # that would cross an image boundary — all loads/stores stay
            # (8,128)-aligned, no sliced RMW.
            p_up = jnp.dot(src_bf, w_ref[3 * idx + 0],
                           preferred_element_type=jnp.float32)
            p_mid = jnp.dot(src_bf, w_ref[3 * idx + 1],
                            preferred_element_type=jnp.float32)
            p_dn = jnp.dot(src_bf, w_ref[3 * idx + 2],
                           preferred_element_type=jnp.float32)
            return (p_mid
                    + pltpu.roll(p_up, 1, axis=0) * m_up        # out[r] += p_up[r-1]
                    + pltpu.roll(p_dn, NH - 1, axis=0) * m_dn)  # out[r] += p_dn[r+1]

        def batchnorm(t, idx):
            # Training-mode BN over (N, H, W) per channel (biased variance),
            # applied as one fused per-channel scale/shift.  Stats and
            # scale/shift are stacked 2 rows deep -> 2 tiny MXU matmuls per BN.
            inv_cnt = 1.0 / float(N * H * W)
            s1 = jnp.sum(t, axis=0, keepdims=True)               # (1, WC)
            s2 = jnp.sum(t * t, axis=0, keepdims=True)            # (1, WC)
            s = e0 * s1 + (1.0 - e0) * s2                          # (2, WC)
            st = jnp.dot(s, sel, preferred_element_type=jnp.float32) * inv_cnt
            mean = st[0:1, :]                                      # (1, C)
            var = st[1:2, :] - mean * mean                         # (1, C)
            gamma = bnp[2 * idx:2 * idx + 1, :]
            beta = bnp[2 * idx + 1:2 * idx + 2, :]
            scale_c = gamma * lax.rsqrt(var + EPS)                 # (1, C)
            shift_c = beta - mean * scale_c                        # (1, C)
            ss = jnp.dot(e0 * scale_c + (1.0 - e0) * shift_c, selT,
                         preferred_element_type=jnp.float32)       # (2, WC)
            return t * ss[0:1, :] + ss[1:2, :]

        x = x_ref[...]
        # ---- conv1 -> bn1 -> prelu (conv bias omitted: cancelled by BN) -----
        t = conv3x3(x.astype(jnp.bfloat16), 0)    # one bf16 cast per conv source
        t = batchnorm(t, 0)
        t = jnp.where(t >= 0.0, t, t * alpha)     # PReLU
        # ---- conv2 -> bn2 -> residual add -----------------------------------
        t = conv3x3(t.astype(jnp.bfloat16), 1)
        t = batchnorm(t, 1)
        o_ref[...] = x + t
        # TODO(synk): BatchNorm running_mean / running_var buffer updates
        # (a training-time side effect of the PyTorch module) are not reproduced.
        # TODO(synk): for real SRGAN sizes (C=64, large H*W) this should become
        # a gridded two-pass kernel (conv + partial BN stats, then normalize),
        # with the expanded weights streamed via BlockSpec and the row axis
        # marked "parallel" so v7x's 64 MiB VMEM / second TensorCore are used;
        # at these VMEM-resident sizes a single invocation is fastest.

    flops = 12 * NH * WC * WC                    # 2 convs x 3 full-slab matmuls
    bytes_accessed = 4 * (2 * NH * WC + 4 * C + 1) + 2 * 6 * WC * WC
    call = pl.pallas_call(
        kernel,
        out_shape=jax.ShapeDtypeStruct((NH, WC), jnp.float32),
        input_output_aliases={0: 0},             # reuse x-slab HBM buffer for out
        compiler_params=pltpu.CompilerParams(
            vmem_limit_bytes=32 * 1024 * 1024),
        cost_estimate=pl.CostEstimate(flops=flops, transcendentals=2 * C,
                                      bytes_accessed=bytes_accessed),
    )

    def expand_weights(w):
        # torch (O, I, 3, 3) conv weights -> three block-tridiagonal (WC, WC)
        # matrices (one per vertical tap ky), kx taps + horizontal zero
        # padding folded in:
        #   M_ky[wi*C+ci, wo*C+co] = w[co, ci, ky, wi-wo+1]   (|wi-wo| <= 1)
        # Precomputed here in plain XLA (perf review) instead of being rebuilt
        # on-chip every call; only ~2*3*WC^2 bf16 bytes of extra HBM traffic.
        taps = jnp.transpose(w, (2, 3, 1, 0)).astype(jnp.float32)   # (ky,kx,ci,co)
        d = jnp.arange(W)[:, None] - jnp.arange(W)[None, :]          # wi - wo
        mats = []
        for ky in range(3):
            blk = jnp.zeros((W, W, C, C), jnp.float32)
            for kx in range(3):
                blk = blk + jnp.where((d == (kx - 1))[:, :, None, None],
                                      taps[ky, kx][None, None, :, :], 0.0)
            mats.append(blk.transpose(0, 2, 1, 3).reshape(WC, WC))   # (wi,ci,wo,co)
        return jnp.stack(mats)                                        # (3, WC, WC)

    def forward(x_nchw, params):
        (w1, b1, g1, bt1, a, w2, b2, g2, bt2) = params
        # b1 / b2 intentionally unused: a conv bias immediately followed by
        # training-mode BatchNorm is mathematically a no-op.
        del b1, b2

        # NCHW -> lane-dense (N*H, W*C) slab (NHWC flattened).
        x2d = jnp.transpose(x_nchw, (0, 2, 3, 1)).reshape(NH, WC)
        x2d = x2d.astype(jnp.float32)

        wexp = jnp.concatenate([expand_weights(w1), expand_weights(w2)],
                               axis=0).astype(jnp.bfloat16)           # (6, WC, WC)
        bnp = jnp.stack([g1, bt1, g2, bt2]).astype(jnp.float32).reshape(4, C)
        a_r = jnp.asarray(a, jnp.float32).reshape(1, 1)

        o2d = call(x2d, wexp, bnp, a_r)
        return o2d.reshape(N, H, W, C).transpose(0, 3, 1, 2)          # NCHW

    return forward


def reference(x, params):
    """Pure-JAX reference matching the PyTorch module (training-mode BN)."""
    (w1, b1, g1, bt1, a, w2, b2, g2, bt2) = params

    def conv(t, w, b):
        y = lax.conv_general_dilated(
            t, w, window_strides=(1, 1), padding='SAME',
            dimension_numbers=('NCHW', 'OIHW', 'NCHW'),
            precision=lax.Precision.HIGHEST)
        return y + b[None, :, None, None]

    def bn(t, g, bt):
        mean = jnp.mean(t, axis=(0, 2, 3), keepdims=True)
        var = jnp.mean((t - mean) ** 2, axis=(0, 2, 3), keepdims=True)
        return (t - mean) * lax.rsqrt(var + EPS) * g[None, :, None, None] \
            + bt[None, :, None, None]

    t = conv(x, w1, b1)
    t = bn(t, g1, bt1)
    t = jnp.where(t >= 0, t, a * t)
    t = conv(t, w2, b2)
    t = bn(t, g2, bt2)
    return x + t


if __name__ == "__main__":
    N, C, H, W = 2, 8, 16, 16
    key = jax.random.PRNGKey(0)
    ks = jax.random.split(key, 9)

    x = jax.random.normal(ks[0], (N, C, H, W), dtype=jnp.float32)
    w1 = 0.1 * jax.random.normal(ks[1], (C, C, 3, 3), dtype=jnp.float32)
    b1 = 0.1 * jax.random.normal(ks[2], (C,), dtype=jnp.float32)
    g1 = 1.0 + 0.1 * jax.random.normal(ks[3], (C,), dtype=jnp.float32)
    bt1 = 0.1 * jax.random.normal(ks[4], (C,), dtype=jnp.float32)
    a = jnp.float32(0.25)  # PReLU default init
    w2 = 0.1 * jax.random.normal(ks[5], (C, C, 3, 3), dtype=jnp.float32)
    b2 = 0.1 * jax.random.normal(ks[6], (C,), dtype=jnp.float32)
    g2 = 1.0 + 0.1 * jax.random.normal(ks[7], (C,), dtype=jnp.float32)
    bt2 = 0.1 * jax.random.normal(ks[8], (C,), dtype=jnp.float32)
    params = (w1, b1, g1, bt1, a, w2, b2, g2, bt2)

    fwd = make_residual_block(N, C, H, W)
    out = jax.block_until_ready(jax.jit(fwd)(x, params))
    ref = jax.block_until_ready(reference(x, params))

    assert out.shape == x.shape and out.dtype == x.dtype
    max_err = float(jnp.max(jnp.abs(out - ref)))
    assert max_err < 5e-2, f"max abs error {max_err}"
    print("KERNEL_OK")
</pallas_src>

<mosaic_0001>
module attributes {stable_mosaic.version = 11 : i64} {
  func.func @kernel(%arg0: memref<32x128xf32, #tpu.memory_space<vmem>>, %arg1: memref<6x128x128xbf16, #tpu.memory_space<vmem>>, %arg2: memref<4x8xf32, #tpu.memory_space<vmem>>, %arg3: memref<1x1xf32, #tpu.memory_space<vmem>>, %arg4: memref<32x128xf32, #tpu.memory_space<vmem>>) attributes {dimension_semantics = [], scalar_prefetch = 0 : i64, scratch_operands = 0 : i64, tpu.core_type = #tpu.core_type<tc>} {
    %0 = tpu.iota {dimensions = array<i32: 0>} : vector<128x8xi32>
    %c8_i32 = arith.constant 8 : i32
    %c0_i32 = arith.constant 0 : i32
    %1 = arith.cmpi eq, %c8_i32, %c0_i32 : i32
    %c1_i32 = arith.constant 1 : i32
    %2 = arith.select %1, %c1_i32, %c8_i32 : i32
    %3 = vector.broadcast %2 : i32 to vector<128x8xi32>
    %4 = arith.remsi %0, %3 : vector<128x8xi32>
    %c0_i32_0 = arith.constant 0 : i32
    %5 = vector.broadcast %c0_i32_0 : i32 to vector<128x8xi32>
    %6 = arith.cmpi ne, %4, %5 : vector<128x8xi32>
    %c0_i32_1 = arith.constant 0 : i32
    %7 = vector.broadcast %c0_i32_1 : i32 to vector<128x8xi32>
    %8 = arith.cmpi slt, %4, %7 : vector<128x8xi32>
    %c0_i32_2 = arith.constant 0 : i32
    %9 = arith.cmpi slt, %2, %c0_i32_2 : i32
    %10 = vector.broadcast %9 : i1 to vector<128x8xi1>
    %11 = vector.broadcast %10 : vector<128x8xi1> to vector<128x8xi1>
    %12 = arith.xori %8, %11 : vector<128x8xi1>
    %13 = arith.andi %12, %6 : vector<128x8xi1>
    %14 = vector.broadcast %2 : i32 to vector<128x8xi32>
    %15 = arith.addi %4, %14 : vector<128x8xi32>
    %16 = arith.select %13, %15, %4 : vector<128x8xi1>, vector<128x8xi32>
    %17 = tpu.iota {dimensions = array<i32: 1>} : vector<128x8xi32>
    %18 = arith.cmpi eq, %16, %17 : vector<128x8xi32>
    %19 = arith.extui %18 : vector<128x8xi1> to vector<128x8xi32>
    %20 = arith.sitofp %19 : vector<128x8xi32> to vector<128x8xf32>
    %21 = tpu.iota {dimensions = array<i32: 1>} : vector<8x128xi32>
    %c8_i32_3 = arith.constant 8 : i32
    %c0_i32_4 = arith.constant 0 : i32
    %22 = arith.cmpi eq, %c8_i32_3, %c0_i32_4 : i32
    %c1_i32_5 = arith.constant 1 : i32
    %23 = arith.select %22, %c1_i32_5, %c8_i32_3 : i32
    %24 = vector.broadcast %23 : i32 to vector<8x128xi32>
    %25 = arith.remsi %21, %24 : vector<8x128xi32>
    %c0_i32_6 = arith.constant 0 : i32
    %26 = vector.broadcast %c0_i32_6 : i32 to vector<8x128xi32>
    %27 = arith.cmpi ne, %25, %26 : vector<8x128xi32>
    %c0_i32_7 = arith.constant 0 : i32
    %28 = vector.broadcast %c0_i32_7 : i32 to vector<8x128xi32>
    %29 = arith.cmpi slt, %25, %28 : vector<8x128xi32>
    %c0_i32_8 = arith.constant 0 : i32
    %30 = arith.cmpi slt, %23, %c0_i32_8 : i32
    %31 = vector.broadcast %30 : i1 to vector<8x128xi1>
    %32 = vector.broadcast %31 : vector<8x128xi1> to vector<8x128xi1>
    %33 = arith.xori %29, %32 : vector<8x128xi1>
    %34 = arith.andi %33, %27 : vector<8x128xi1>
    %35 = vector.broadcast %23 : i32 to vector<8x128xi32>
    %36 = arith.addi %25, %35 : vector<8x128xi32>
    %37 = arith.select %34, %36, %25 : vector<8x128xi1>, vector<8x128xi32>
    %38 = tpu.iota {dimensions = array<i32: 0>} : vector<8x128xi32>
    %39 = arith.cmpi eq, %37, %38 : vector<8x128xi32>
    %40 = arith.extui %39 : vector<8x128xi1> to vector<8x128xi32>
    %41 = arith.sitofp %40 : vector<8x128xi32> to vector<8x128xf32>
    %42 = tpu.iota {dimensions = array<i32: 0>} : vector<32x1xi32>
    %c16_i32 = arith.constant 16 : i32
    %c0_i32_9 = arith.constant 0 : i32
    %43 = arith.cmpi eq, %c16_i32, %c0_i32_9 : i32
    %c1_i32_10 = arith.constant 1 : i32
    %44 = arith.select %43, %c1_i32_10, %c16_i32 : i32
    %45 = vector.broadcast %44 : i32 to vector<32x1xi32>
    %46 = arith.remsi %42, %45 : vector<32x1xi32>
    %c0_i32_11 = arith.constant 0 : i32
    %47 = vector.broadcast %c0_i32_11 : i32 to vector<32x1xi32>
    %48 = arith.cmpi ne, %46, %47 : vector<32x1xi32>
    %c0_i32_12 = arith.constant 0 : i32
    %49 = vector.broadcast %c0_i32_12 : i32 to vector<32x1xi32>
    %50 = arith.cmpi slt, %46, %49 : vector<32x1xi32>
    %c0_i32_13 = arith.constant 0 : i32
    %51 = arith.cmpi slt, %44, %c0_i32_13 : i32
    %52 = vector.broadcast %51 : i1 to vector<32x1xi1>
    %53 = vector.broadcast %52 : vector<32x1xi1> to vector<32x1xi1>
    %54 = arith.xori %50, %53 : vector<32x1xi1>
    %55 = arith.andi %54, %48 : vector<32x1xi1>
    %56 = vector.broadcast %44 : i32 to vector<32x1xi32>
    %57 = arith.addi %46, %56 : vector<32x1xi32>
    %58 = arith.select %55, %57, %46 : vector<32x1xi1>, vector<32x1xi32>
    %c0_i32_14 = arith.constant 0 : i32
    %59 = vector.broadcast %c0_i32_14 : i32 to vector<32x1xi32>
    %60 = arith.cmpi ne, %58, %59 : vector<32x1xi32>
    %61 = arith.extui %60 : vector<32x1xi1> to vector<32x1xi32>
    %62 = arith.sitofp %61 : vector<32x1xi32> to vector<32x1xf32>
    %c15_i32 = arith.constant 15 : i32
    %63 = vector.broadcast %c15_i32 : i32 to vector<32x1xi32>
    %64 = arith.cmpi ne, %58, %63 : vector<32x1xi32>
    %65 = arith.extui %64 : vector<32x1xi1> to vector<32x1xi32>
    %66 = arith.sitofp %65 : vector<32x1xi32> to vector<32x1xf32>
    %67 = tpu.iota {dimensions = array<i32: 0>} : vector<2x1xi32>
    %c0_i32_15 = arith.constant 0 : i32
    %68 = vector.broadcast %c0_i32_15 : i32 to vector<2x1xi32>
    %69 = arith.cmpi eq, %67, %68 : vector<2x1xi32>
    %70 = arith.extui %69 : vector<2x1xi1> to vector<2x1xi32>
    %71 = arith.sitofp %70 : vector<2x1xi32> to vector<2x1xf32>
    %c0 = arith.constant 0 : index
    %c0_16 = arith.constant 0 : index
    %72 = vector.load %arg2[%c0, %c0_16] : memref<4x8xf32, #tpu.memory_space<vmem>>, vector<4x8xf32>
    %c0_17 = arith.constant 0 : index
    %c0_18 = arith.constant 0 : index
    %73 = vector.load %arg3[%c0_17, %c0_18] : memref<1x1xf32, #tpu.memory_space<vmem>>, vector<1x1xf32>
    %c0_19 = arith.constant 0 : index
    %c0_20 = arith.constant 0 : index
    %74 = vector.load %arg0[%c0_19, %c0_20] : memref<32x128xf32, #tpu.memory_space<vmem>>, vector<32x128xf32>
    %75 = arith.truncf %74 : vector<32x128xf32> to vector<32x128xbf16>
    %c0_21 = arith.constant 0 : index
    %c0_22 = arith.constant 0 : index
    %c0_23 = arith.constant 0 : index
    %76 = vector.load %arg1[%c0_21, %c0_22, %c0_23] : memref<6x128x128xbf16, #tpu.memory_space<vmem>>, vector<1x128x128xbf16>
    %77 = vector.shape_cast %76 : vector<1x128x128xbf16> to vector<128x128xbf16>
    %cst = arith.constant dense<0.000000e+00> : vector<32x128xf32>
    %78 = tpu.matmul %75, %77, %cst {dimension_numbers = #tpu.dot_dimension_numbers<[1], [0], [0], [1], [0, 0, 1, 1], [], []>} : vector<32x128xbf16>, vector<128x128xbf16>, vector<32x128xf32> -> vector<32x128xf32>
    %c1 = arith.constant 1 : index
    %c0_24 = arith.constant 0 : index
    %c0_25 = arith.constant 0 : index
    %79 = vector.load %arg1[%c1, %c0_24, %c0_25] : memref<6x128x128xbf16, #tpu.memory_space<vmem>>, vector<1x128x128xbf16>
    %80 = vector.shape_cast %79 : vector<1x128x128xbf16> to vector<128x128xbf16>
    %cst_26 = arith.constant dense<0.000000e+00> : vector<32x128xf32>
    %81 = tpu.matmul %75, %80, %cst_26 {dimension_numbers = #tpu.dot_dimension_numbers<[1], [0], [0], [1], [0, 0, 1, 1], [], []>} : vector<32x128xbf16>, vector<128x128xbf16>, vector<32x128xf32> -> vector<32x128xf32>
    %c2 = arith.constant 2 : index
    %c0_27 = arith.constant 0 : index
    %c0_28 = arith.constant 0 : index
    %82 = vector.load %arg1[%c2, %c0_27, %c0_28] : memref<6x128x128xbf16, #tpu.memory_space<vmem>>, vector<1x128x128xbf16>
    %83 = vector.shape_cast %82 : vector<1x128x128xbf16> to vector<128x128xbf16>
    %cst_29 = arith.constant dense<0.000000e+00> : vector<32x128xf32>
    %84 = tpu.matmul %75, %83, %cst_29 {dimension_numbers = #tpu.dot_dimension_numbers<[1], [0], [0], [1], [0, 0, 1, 1], [], []>} : vector<32x128xbf16>, vector<128x128xbf16>, vector<32x128xf32> -> vector<32x128xf32>
    %c1_i32_30 = arith.constant 1 : i32
    %85 = tpu.dynamic_rotate %78 by %c1_i32_30 dim 0 : vector<32x128xf32>, i32 -> vector<32x128xf32>
    %86 = vector.broadcast %62 : vector<32x1xf32> to vector<32x128xf32>
    %87 = arith.mulf %85, %86 : vector<32x128xf32>
    %88 = arith.addf %81, %87 : vector<32x128xf32>
    %c31_i32 = arith.constant 31 : i32
    %89 = tpu.dynamic_rotate %84 by %c31_i32 dim 0 : vector<32x128xf32>, i32 -> vector<32x128xf32>
    %90 = vector.broadcast %66 : vector<32x1xf32> to vector<32x128xf32>
    %91 = arith.mulf %89, %90 : vector<32x128xf32>
    %92 = arith.addf %88, %91 : vector<32x128xf32>
    %cst_31 = arith.constant dense<0.000000e+00> : vector<128xf32>
    %93 = vector.multi_reduction <add>, %92, %cst_31 [0] : vector<32x128xf32> to vector<128xf32>
    %94 = vector.shape_cast %93 : vector<128xf32> to vector<1x128xf32>
    %95 = arith.mulf %92, %92 : vector<32x128xf32>
    %cst_32 = arith.constant dense<0.000000e+00> : vector<128xf32>
    %96 = vector.multi_reduction <add>, %95, %cst_32 [0] : vector<32x128xf32> to vector<128xf32>
    %97 = vector.shape_cast %96 : vector<128xf32> to vector<1x128xf32>
    %98 = vector.broadcast %71 : vector<2x1xf32> to vector<2x128xf32>
    %99 = vector.broadcast %94 : vector<1x128xf32> to vector<2x128xf32>
    %100 = arith.mulf %98, %99 : vector<2x128xf32>
    %cst_33 = arith.constant 1.000000e+00 : f32
    %101 = vector.broadcast %cst_33 : f32 to vector<2x1xf32>
    %102 = arith.subf %101, %71 : vector<2x1xf32>
    %103 = vector.broadcast %102 : vector<2x1xf32> to vector<2x128xf32>
    %104 = vector.broadcast %97 : vector<1x128xf32> to vector<2x128xf32>
    %105 = arith.mulf %103, %104 : vector<2x128xf32>
    %106 = arith.addf %100, %105 : vector<2x128xf32>
    %cst_34 = arith.constant dense<0.000000e+00> : vector<2x8xf32>
    %107 = tpu.matmul %106, %20, %cst_34 {dimension_numbers = #tpu.dot_dimension_numbers<[1], [0], [0], [1], [0, 0, 1, 1], [], []>} : vector<2x128xf32>, vector<128x8xf32>, vector<2x8xf32> -> vector<2x8xf32>
    %cst_35 = arith.constant 0.001953125 : f32
    %108 = vector.broadcast %cst_35 : f32 to vector<2x8xf32>
    %109 = arith.mulf %107, %108 : vector<2x8xf32>
    %110 = vector.extract_strided_slice %109 {offsets = [0, 0], sizes = [1, 8], strides = [1, 1]} : vector<2x8xf32> to vector<1x8xf32>
    %111 = vector.extract_strided_slice %109 {offsets = [1, 0], sizes = [1, 8], strides = [1, 1]} : vector<2x8xf32> to vector<1x8xf32>
    %112 = arith.mulf %110, %110 : vector<1x8xf32>
    %113 = arith.subf %111, %112 : vector<1x8xf32>
    %114 = vector.extract_strided_slice %72 {offsets = [0, 0], sizes = [1, 8], strides = [1, 1]} : vector<4x8xf32> to vector<1x8xf32>
    %115 = vector.extract_strided_slice %72 {offsets = [1, 0], sizes = [1, 8], strides = [1, 1]} : vector<4x8xf32> to vector<1x8xf32>
    %cst_36 = arith.constant 9.99999974E-6 : f32
    %116 = vector.broadcast %cst_36 : f32 to vector<1x8xf32>
    %117 = arith.addf %113, %116 : vector<1x8xf32>
    %118 = math.rsqrt %117 : vector<1x8xf32>
    %119 = arith.mulf %114, %118 : vector<1x8xf32>
    %120 = arith.mulf %110, %119 : vector<1x8xf32>
    %121 = arith.subf %115, %120 : vector<1x8xf32>
    %122 = vector.broadcast %71 : vector<2x1xf32> to vector<2x8xf32>
    %123 = vector.broadcast %119 : vector<1x8xf32> to vector<2x8xf32>
    %124 = arith.mulf %122, %123 : vector<2x8xf32>
    %cst_37 = arith.constant 1.000000e+00 : f32
    %125 = vector.broadcast %cst_37 : f32 to vector<2x1xf32>
    %126 = arith.subf %125, %71 : vector<2x1xf32>
    %127 = vector.broadcast %126 : vector<2x1xf32> to vector<2x8xf32>
    %128 = vector.broadcast %121 : vector<1x8xf32> to vector<2x8xf32>
    %129 = arith.mulf %127, %128 : vector<2x8xf32>
    %130 = arith.addf %124, %129 : vector<2x8xf32>
    %cst_38 = arith.constant dense<0.000000e+00> : vector<2x128xf32>
    %131 = tpu.matmul %130, %41, %cst_38 {dimension_numbers = #tpu.dot_dimension_numbers<[1], [0], [0], [1], [0, 0, 1, 1], [], []>} : vector<2x8xf32>, vector<8x128xf32>, vector<2x128xf32> -> vector<2x128xf32>
    %132 = vector.extract_strided_slice %131 {offsets = [0, 0], sizes = [1, 128], strides = [1, 1]} : vector<2x128xf32> to vector<1x128xf32>
    %133 = vector.broadcast %132 : vector<1x128xf32> to vector<32x128xf32>
    %134 = arith.mulf %92, %133 : vector<32x128xf32>
    %135 = vector.extract_strided_slice %131 {offsets = [1, 0], sizes = [1, 128], strides = [1, 1]} : vector<2x128xf32> to vector<1x128xf32>
    %136 = vector.broadcast %135 : vector<1x128xf32> to vector<32x128xf32>
    %137 = arith.addf %134, %136 : vector<32x128xf32>
    %cst_39 = arith.constant 0.000000e+00 : f32
    %138 = vector.broadcast %cst_39 : f32 to vector<32x128xf32>
    %139 = arith.cmpf oge, %137, %138 : vector<32x128xf32>
    %140 = vector.broadcast %73 : vector<1x1xf32> to vector<32x128xf32>
    %141 = arith.mulf %137, %140 : vector<32x128xf32>
    %142 = arith.select %139, %137, %141 : vector<32x128xi1>, vector<32x128xf32>
    %143 = arith.truncf %142 : vector<32x128xf32> to vector<32x128xbf16>
    %c3 = arith.constant 3 : index
    %c0_40 = arith.constant 0 : index
    %c0_41 = arith.constant 0 : index
    %144 = vector.load %arg1[%c3, %c0_40, %c0_41] : memref<6x128x128xbf16, #tpu.memory_space<vmem>>, vector<1x128x128xbf16>
    %145 = vector.shape_cast %144 : vector<1x128x128xbf16> to vector<128x128xbf16>
    %cst_42 = arith.constant dense<0.000000e+00> : vector<32x128xf32>
    %146 = tpu.matmul %143, %145, %cst_42 {dimension_numbers = #tpu.dot_dimension_numbers<[1], [0], [0], [1], [0, 0, 1, 1], [], []>} : vector<32x128xbf16>, vector<128x128xbf16>, vector<32x128xf32> -> vector<32x128xf32>
    %c4 = arith.constant 4 : index
    %c0_43 = arith.constant 0 : index
    %c0_44 = arith.constant 0 : index
    %147 = vector.load %arg1[%c4, %c0_43, %c0_44] : memref<6x128x128xbf16, #tpu.memory_space<vmem>>, vector<1x128x128xbf16>
    %148 = vector.shape_cast %147 : vector<1x128x128xbf16> to vector<128x128xbf16>
    %cst_45 = arith.constant dense<0.000000e+00> : vector<32x128xf32>
    %149 = tpu.matmul %143, %148, %cst_45 {dimension_numbers = #tpu.dot_dimension_numbers<[1], [0], [0], [1], [0, 0, 1, 1], [], []>} : vector<32x128xbf16>, vector<128x128xbf16>, vector<32x128xf32> -> vector<32x128xf32>
    %c5 = arith.constant 5 : index
    %c0_46 = arith.constant 0 : index
    %c0_47 = arith.constant 0 : index
    %150 = vector.load %arg1[%c5, %c0_46, %c0_47] : memref<6x128x128xbf16, #tpu.memory_space<vmem>>, vector<1x128x128xbf16>
    %151 = vector.shape_cast %150 : vector<1x128x128xbf16> to vector<128x128xbf16>
    %cst_48 = arith.constant dense<0.000000e+00> : vector<32x128xf32>
    %152 = tpu.matmul %143, %151, %cst_48 {dimension_numbers = #tpu.dot_dimension_numbers<[1], [0], [0], [1], [0, 0, 1, 1], [], []>} : vector<32x128xbf16>, vector<128x128xbf16>, vector<32x128xf32> -> vector<32x128xf32>
    %c1_i32_49 = arith.constant 1 : i32
    %153 = tpu.dynamic_rotate %146 by %c1_i32_49 dim 0 : vector<32x128xf32>, i32 -> vector<32x128xf32>
    %154 = vector.broadcast %62 : vector<32x1xf32> to vector<32x128xf32>
    %155 = arith.mulf %153, %154 : vector<32x128xf32>
    %156 = arith.addf %149, %155 : vector<32x128xf32>
    %c31_i32_50 = arith.constant 31 : i32
    %157 = tpu.dynamic_rotate %152 by %c31_i32_50 dim 0 : vector<32x128xf32>, i32 -> vector<32x128xf32>
    %158 = vector.broadcast %66 : vector<32x1xf32> to vector<32x128xf32>
    %159 = arith.mulf %157, %158 : vector<32x128xf32>
    %160 = arith.addf %156, %159 : vector<32x128xf32>
    %cst_51 = arith.constant dense<0.000000e+00> : vector<128xf32>
    %161 = vector.multi_reduction <add>, %160, %cst_51 [0] : vector<32x128xf32> to vector<128xf32>
    %162 = vector.shape_cast %161 : vector<128xf32> to vector<1x128xf32>
    %163 = arith.mulf %160, %160 : vector<32x128xf32>
    %cst_52 = arith.constant dense<0.000000e+00> : vector<128xf32>
    %164 = vector.multi_reduction <add>, %163, %cst_52 [0] : vector<32x128xf32> to vector<128xf32>
    %165 = vector.shape_cast %164 : vector<128xf32> to vector<1x128xf32>
    %166 = vector.broadcast %71 : vector<2x1xf32> to vector<2x128xf32>
    %167 = vector.broadcast %162 : vector<1x128xf32> to vector<2x128xf32>
    %168 = arith.mulf %166, %167 : vector<2x128xf32>
    %cst_53 = arith.constant 1.000000e+00 : f32
    %169 = vector.broadcast %cst_53 : f32 to vector<2x1xf32>
    %170 = arith.subf %169, %71 : vector<2x1xf32>
    %171 = vector.broadcast %170 : vector<2x1xf32> to vector<2x128xf32>
    %172 = vector.broadcast %165 : vector<1x128xf32> to vector<2x128xf32>
    %173 = arith.mulf %171, %172 : vector<2x128xf32>
    %174 = arith.addf %168, %173 : vector<2x128xf32>
    %cst_54 = arith.constant dense<0.000000e+00> : vector<2x8xf32>
    %175 = tpu.matmul %174, %20, %cst_54 {dimension_numbers = #tpu.dot_dimension_numbers<[1], [0], [0], [1], [0, 0, 1, 1], [], []>} : vector<2x128xf32>, vector<128x8xf32>, vector<2x8xf32> -> vector<2x8xf32>
    %cst_55 = arith.constant 0.001953125 : f32
    %176 = vector.broadcast %cst_55 : f32 to vector<2x8xf32>
    %177 = arith.mulf %175, %176 : vector<2x8xf32>
    %178 = vector.extract_strided_slice %177 {offsets = [0, 0], sizes = [1, 8], strides = [1, 1]} : vector<2x8xf32> to vector<1x8xf32>
    %179 = vector.extract_strided_slice %177 {offsets = [1, 0], sizes = [1, 8], strides = [1, 1]} : vector<2x8xf32> to vector<1x8xf32>
    %180 = arith.mulf %178, %178 : vector<1x8xf32>
    %181 = arith.subf %179, %180 : vector<1x8xf32>
    %182 = vector.extract_strided_slice %72 {offsets = [2, 0], sizes = [1, 8], strides = [1, 1]} : vector<4x8xf32> to vector<1x8xf32>
    %183 = vector.extract_strided_slice %72 {offsets = [3, 0], sizes = [1, 8], strides = [1, 1]} : vector<4x8xf32> to vector<1x8xf32>
    %cst_56 = arith.constant 9.99999974E-6 : f32
    %184 = vector.broadcast %cst_56 : f32 to vector<1x8xf32>
    %185 = arith.addf %181, %184 : vector<1x8xf32>
    %186 = math.rsqrt %185 : vector<1x8xf32>
    %187 = arith.mulf %182, %186 : vector<1x8xf32>
    %188 = arith.mulf %178, %187 : vector<1x8xf32>
    %189 = arith.subf %183, %188 : vector<1x8xf32>
    %190 = vector.broadcast %71 : vector<2x1xf32> to vector<2x8xf32>
    %191 = vector.broadcast %187 : vector<1x8xf32> to vector<2x8xf32>
    %192 = arith.mulf %190, %191 : vector<2x8xf32>
    %cst_57 = arith.constant 1.000000e+00 : f32
    %193 = vector.broadcast %cst_57 : f32 to vector<2x1xf32>
    %194 = arith.subf %193, %71 : vector<2x1xf32>
    %195 = vector.broadcast %194 : vector<2x1xf32> to vector<2x8xf32>
    %196 = vector.broadcast %189 : vector<1x8xf32> to vector<2x8xf32>
    %197 = arith.mulf %195, %196 : vector<2x8xf32>
    %198 = arith.addf %192, %197 : vector<2x8xf32>
    %cst_58 = arith.constant dense<0.000000e+00> : vector<2x128xf32>
    %199 = tpu.matmul %198, %41, %cst_58 {dimension_numbers = #tpu.dot_dimension_numbers<[1], [0], [0], [1], [0, 0, 1, 1], [], []>} : vector<2x8xf32>, vector<8x128xf32>, vector<2x128xf32> -> vector<2x128xf32>
    %200 = vector.extract_strided_slice %199 {offsets = [0, 0], sizes = [1, 128], strides = [1, 1]} : vector<2x128xf32> to vector<1x128xf32>
    %201 = vector.broadcast %200 : vector<1x128xf32> to vector<32x128xf32>
    %202 = arith.mulf %160, %201 : vector<32x128xf32>
    %203 = vector.extract_strided_slice %199 {offsets = [1, 0], sizes = [1, 128], strides = [1, 1]} : vector<2x128xf32> to vector<1x128xf32>
    %204 = vector.broadcast %203 : vector<1x128xf32> to vector<32x128xf32>
    %205 = arith.addf %202, %204 : vector<32x128xf32>
    %206 = arith.addf %74, %205 : vector<32x128xf32>
    %c0_59 = arith.constant 0 : index
    %c0_60 = arith.constant 0 : index
    %207 = vector.load %arg4[%c0_59, %c0_60] : memref<32x128xf32, #tpu.memory_space<vmem>>, vector<32x128xf32>
    tpu.vector_store %arg4[%c0_59, %c0_60], %206 {strides = array<i32>} : memref<32x128xf32, #tpu.memory_space<vmem>>, vector<32x128xf32>,
    return
  }
}

</mosaic_0001>

<llo_original>
// kernel: forward.1
$region0: #{forward.1}
  #allocation0 [shape = 'u32[]', space=smem, size = 0x4, offset = 0x4, fixed_abs, tag = 'smem constant byte address 0x4 - core index']
  #allocation1 [shape = 'u32[144,128]{1,0:T(1,128)}', space=vmem, size = 0x12000, scoped, tag = 'internal scratch']
  #allocation2 [shape = 'f32[1,1]{1,0:T(1,128)S(1)}', space=vmem, size = 0x200, scoped, tag = 'scoped memory for forward.1']
  %s0 = inlined_call_operand.vmem [shape: f32[32,128], index: 0, kind: input, shape index: {}, may-alias: {0,4}]
  %s1 = inlined_call_operand.vmem [shape: bf16[6,128,128], index: 1, kind: input, shape index: {}]
  %s2 = inlined_call_operand.vmem [shape: f32[4,8], index: 2, kind: input, shape index: {}]
  %s3 = inlined_call_operand.<no memory space> [shape: f32[1,1], index: 3, kind: input, shape index: {}]
  %s4 = inlined_call_operand.vmem [shape: f32[32,128], index: 4, kind: output, shape index: {}, may-alias: {0,4}]
  %s5 = sld [smem:[#allocation0]]
  $region26: #{forward.1} parent=0
    _
  %s7 = ssub.s32 1, %s5
  %s8 = scalar_select 0, %s7, %s5
  %v9 = vstv %s3
  %10 = vst [vmem:[#allocation2] sm:$0x1] %v9
  // Predicated region
  $region2: #{forward.1} parent=0 // pred_check
    _
  $region3: #{forward.1} parent=0 // pred_check_branch
    %12 = sbr.rel (0) target = $region5
  $region4: #{forward.1} parent=0 // pred_region
    _
  $region5: #{forward.1} parent=0 // pred_fallthru
    _
  // Predicated region
  $region6: #{forward.1} parent=0 // pred_check
    _
  $region7: #{forward.1} parent=0 // pred_check_branch
    %14 = sbr.rel (0) target = $region9
  $region8: #{forward.1} parent=0 // pred_region
    _
  $region9: #{forward.1} parent=0 // pred_fallthru
    _
  // Predicated region
  $region10: #{forward.1} parent=0 // pred_check
    _
  $region11: #{forward.1} parent=0 // pred_check_branch
    %16 = sbr.rel (0) target = $region13
  $region12: #{forward.1} parent=0 // pred_region
    _
  $region13: #{forward.1} parent=0 // pred_fallthru
    _
  // Predicated region
  $region14: #{forward.1} parent=0 // pred_check
    _
  $region15: #{forward.1} parent=0 // pred_check_branch
    %18 = sbr.rel (0) target = $region17
  $region16: #{forward.1} parent=0 // pred_region
    _
  $region17: #{forward.1} parent=0 // pred_fallthru
    _
  %v20 = vlaneseq
  %v21 = vshrl.u32 %v20, 7
  %v22 = vadd.s32 %v21, 8
  %v23 = vadd.s32 %v21, 16
  %v24 = vadd.s32 %v21, 24
  %v25 = vadd.s32 %v21, 32
  %v26 = vadd.s32 %v21, 40
  %v27 = vadd.s32 %v21, 48
  %v28 = vadd.s32 %v21, 56
  %v29 = vadd.s32 %v21, 64
  %v30 = vadd.s32 %v21, 72
  %v31 = vadd.s32 %v21, 80
  %v32 = vadd.s32 %v21, 88
  %v33 = vadd.s32 %v21, 96
  %v34 = vadd.s32 %v21, 104
  %v35 = vadd.s32 %v21, 112
  %v36 = vadd.s32 %v21, 120
  %vm37 = vcmp.lt.s32.totalorder %v21, 0
  %v38 = vsub.s32 0, %v21
  %v39 = vsel %vm37, %v38, %v21
  %v40 = vshrl.u32 %v39, 3
  %v41 = vand.u32 %v39, 7
  %v42 = vsub.s32 0, %v41
  %v43 = vsel %vm37, %v42, %v41
  %vm44 = vcmp.lt.s32.totalorder %v22, 0
  %v45 = vsub.s32 0, %v22
  %v46 = vsel %vm44, %v45, %v22
  %v47 = vshrl.u32 %v46, 3
  %v48 = vand.u32 %v46, 7
  %v49 = vsub.s32 0, %v48
  %v50 = vsel %vm44, %v49, %v48
  %vm51 = vcmp.lt.s32.totalorder %v23, 0
  %v52 = vsub.s32 0, %v23
  %v53 = vsel %vm51, %v52, %v23
  %v54 = vshrl.u32 %v53, 3
  %v55 = vand.u32 %v53, 7
  %v56 = vsub.s32 0, %v55
  %v57 = vsel %vm51, %v56, %v55
  %vm58 = vcmp.lt.s32.totalorder %v24, 0
  %v59 = vsub.s32 0, %v24
  %v60 = vsel %vm58, %v59, %v24
  %v61 = vshrl.u32 %v60, 3
  %v62 = vand.u32 %v60, 7
  %v63 = vsub.s32 0, %v62
  %v64 = vsel %vm58, %v63, %v62
  %vm65 = vcmp.lt.s32.totalorder %v25, 0
  %v66 = vsub.s32 0, %v25
  %v67 = vsel %vm65, %v66, %v25
  %v68 = vshrl.u32 %v67, 3
  %v69 = vand.u32 %v67, 7
  %v70 = vsub.s32 0, %v69
  %v71 = vsel %vm65, %v70, %v69
  %vm72 = vcmp.lt.s32.totalorder %v26, 0
  %v73 = vsub.s32 0, %v26
  %v74 = vsel %vm72, %v73, %v26
  %v75 = vshrl.u32 %v74, 3
  %v76 = vand.u32 %v74, 7
  %v77 = vsub.s32 0, %v76
  %v78 = vsel %vm72, %v77, %v76
  %vm79 = vcmp.lt.s32.totalorder %v27, 0
  %v80 = vsub.s32 0, %v27
  %v81 = vsel %vm79, %v80, %v27
  %v82 = vshrl.u32 %v81, 3
  %v83 = vand.u32 %v81, 7
  %v84 = vsub.s32 0, %v83
  %v85 = vsel %vm79, %v84, %v83
  %vm86 = vcmp.lt.s32.totalorder %v28, 0
  %v87 = vsub.s32 0, %v28
  %v88 = vsel %vm86, %v87, %v28
  %v89 = vshrl.u32 %v88, 3
  %v90 = vand.u32 %v88, 7
  %v91 = vsub.s32 0, %v90
  %v92 = vsel %vm86, %v91, %v90
  %vm93 = vcmp.lt.s32.totalorder %v29, 0
  %v94 = vsub.s32 0, %v29
  %v95 = vsel %vm93, %v94, %v29
  %v96 = vshrl.u32 %v95, 3
  %v97 = vand.u32 %v95, 7
  %v98 = vsub.s32 0, %v97
  %v99 = vsel %vm93, %v98, %v97
  %vm100 = vcmp.lt.s32.totalorder %v30, 0
  %v101 = vsub.s32 0, %v30
  %v102 = vsel %vm100, %v101, %v30
  %v103 = vshrl.u32 %v102, 3
  %v104 = vand.u32 %v102, 7
  %v105 = vsub.s32 0, %v104
  %v106 = vsel %vm100, %v105, %v104
  %vm107 = vcmp.lt.s32.totalorder %v31, 0
  %v108 = vsub.s32 0, %v31
  %v109 = vsel %vm107, %v108, %v31
  %v110 = vshrl.u32 %v109, 3
  %v111 = vand.u32 %v109, 7
  %v112 = vsub.s32 0, %v111
  %v113 = vsel %vm107, %v112, %v111
  %vm114 = vcmp.lt.s32.totalorder %v32, 0
  %v115 = vsub.s32 0, %v32
  %v116 = vsel %vm114, %v115, %v32
  %v117 = vshrl.u32 %v116, 3
  %v118 = vand.u32 %v116, 7
  %v119 = vsub.s32 0, %v118
  %v120 = vsel %vm114, %v119, %v118
  %vm121 = vcmp.lt.s32.totalorder %v33, 0
  %v122 = vsub.s32 0, %v33
  %v123 = vsel %vm121, %v122, %v33
  %v124 = vshrl.u32 %v123, 3
  %v125 = vand.u32 %v123, 7
  %v126 = vsub.s32 0, %v125
  %v127 = vsel %vm121, %v126, %v125
  %vm128 = vcmp.lt.s32.totalorder %v34, 0
  %v129 = vsub.s32 0, %v34
  %v130 = vsel %vm128, %v129, %v34
  %v131 = vshrl.u32 %v130, 3
  %v132 = vand.u32 %v130, 7
  %v133 = vsub.s32 0, %v132
  %v134 = vsel %vm128, %v133, %v132
  %vm135 = vcmp.lt.s32.totalorder %v35, 0
  %v136 = vsub.s32 0, %v35
  %v137 = vsel %vm135, %v136, %v35
  %v138 = vshrl.u32 %v137, 3
  %v139 = vand.u32 %v137, 7
  %v140 = vsub.s32 0, %v139
  %v141 = vsel %vm135, %v140, %v139
  %vm142 = vcmp.lt.s32.totalorder %v36, 0
  %v143 = vsub.s32 0, %v36
  %v144 = vsel %vm142, %v143, %v36
  %v145 = vshrl.u32 %v144, 3
  %v146 = vand.u32 %v144, 7
  %v147 = vsub.s32 0, %v146
  %v148 = vsel %vm142, %v147, %v146
  %vm149 = vcmp.ne.s32.totalorder %v43, 0
  %vm150 = vcmp.ne.s32.totalorder %v50, 0
  %vm151 = vcmp.ne.s32.totalorder %v57, 0
  %vm152 = vcmp.ne.s32.totalorder %v64, 0
  %vm153 = vcmp.ne.s32.totalorder %v71, 0
  %vm154 = vcmp.ne.s32.totalorder %v78, 0
  %vm155 = vcmp.ne.s32.totalorder %v85, 0
  %vm156 = vcmp.ne.s32.totalorder %v92, 0
  %vm157 = vcmp.ne.s32.totalorder %v99, 0
  %vm158 = vcmp.ne.s32.totalorder %v106, 0
  %vm159 = vcmp.ne.s32.totalorder %v113, 0
  %vm160 = vcmp.ne.s32.totalorder %v120, 0
  %vm161 = vcmp.ne.s32.totalorder %v127, 0
  %vm162 = vcmp.ne.s32.totalorder %v134, 0
  %vm163 = vcmp.ne.s32.totalorder %v141, 0
  %vm164 = vcmp.ne.s32.totalorder %v148, 0
  %vm165 = vcmp.lt.s32.totalorder %v43, 0
  %vm166 = vcmp.lt.s32.totalorder %v50, 0
  %vm167 = vcmp.lt.s32.totalorder %v57, 0
  %vm168 = vcmp.lt.s32.totalorder %v64, 0
  %vm169 = vcmp.lt.s32.totalorder %v71, 0
  %vm170 = vcmp.lt.s32.totalorder %v78, 0
  %vm171 = vcmp.lt.s32.totalorder %v85, 0
  %vm172 = vcmp.lt.s32.totalorder %v92, 0
  %vm173 = vcmp.lt.s32.totalorder %v99, 0
  %vm174 = vcmp.lt.s32.totalorder %v106, 0
  %vm175 = vcmp.lt.s32.totalorder %v113, 0
  %vm176 = vcmp.lt.s32.totalorder %v120, 0
  %vm177 = vcmp.lt.s32.totalorder %v127, 0
  %vm178 = vcmp.lt.s32.totalorder %v134, 0
  %vm179 = vcmp.lt.s32.totalorder %v141, 0
  %vm180 = vcmp.lt.s32.totalorder %v148, 0
  %vm181 = vmand %vm165, %vm149
  %vm182 = vmand %vm166, %vm150
  %vm183 = vmand %vm167, %vm151
  %vm184 = vmand %vm168, %vm152
  %vm185 = vmand %vm169, %vm153
  %vm186 = vmand %vm170, %vm154
  %vm187 = vmand %vm171, %vm155
  %vm188 = vmand %vm172, %vm156
  %vm189 = vmand %vm173, %vm157
  %vm190 = vmand %vm174, %vm158
  %vm191 = vmand %vm175, %vm159
  %vm192 = vmand %vm176, %vm160
  %vm193 = vmand %vm177, %vm161
  %vm194 = vmand %vm178, %vm162
  %vm195 = vmand %vm179, %vm163
  %vm196 = vmand %vm180, %vm164
  %v197 = vadd.s32 %v43, 8
  %v198 = vadd.s32 %v50, 8
  %v199 = vadd.s32 %v57, 8
  %v200 = vadd.s32 %v64, 8
  %v201 = vadd.s32 %v71, 8
  %v202 = vadd.s32 %v78, 8
  %v203 = vadd.s32 %v85, 8
  %v204 = vadd.s32 %v92, 8
  %v205 = vadd.s32 %v99, 8
  %v206 = vadd.s32 %v106, 8
  %v207 = vadd.s32 %v113, 8
  %v208 = vadd.s32 %v120, 8
  %v209 = vadd.s32 %v127, 8
  %v210 = vadd.s32 %v134, 8
  %v211 = vadd.s32 %v141, 8
  %v212 = vadd.s32 %v148, 8
  %v213 = vsel %vm181, %v197, %v43
  %v214 = vsel %vm182, %v198, %v50
  %v215 = vsel %vm183, %v199, %v57
  %v216 = vsel %vm184, %v200, %v64
  %v217 = vsel %vm185, %v201, %v71
  %v218 = vsel %vm186, %v202, %v78
  %v219 = vsel %vm187, %v203, %v85
  %v220 = vsel %vm188, %v204, %v92
  %v221 = vsel %vm189, %v205, %v99
  %v222 = vsel %vm190, %v206, %v106
  %v223 = vsel %vm191, %v207, %v113
  %v224 = vsel %vm192, %v208, %v120
  %v225 = vsel %vm193, %v209, %v127
  %v226 = vsel %vm194, %v210, %v134
  %v227 = vsel %vm195, %v211, %v141
  %v228 = vsel %vm196, %v212, %v148
  %v229 = vlaneseq
  %v230 = vand.u32 %v229, 127
  %vm231 = vcmp.eq.s32.totalorder %v213, %v230
  %vm232 = vcmp.eq.s32.totalorder %v214, %v230
  %vm233 = vcmp.eq.s32.totalorder %v215, %v230
  %vm234 = vcmp.eq.s32.totalorder %v216, %v230
  %vm235 = vcmp.eq.s32.totalorder %v217, %v230
  %vm236 = vcmp.eq.s32.totalorder %v218, %v230
  %vm237 = vcmp.eq.s32.totalorder %v219, %v230
  %vm238 = vcmp.eq.s32.totalorder %v220, %v230
  %vm239 = vcmp.eq.s32.totalorder %v221, %v230
  %vm240 = vcmp.eq.s32.totalorder %v222, %v230
  %vm241 = vcmp.eq.s32.totalorder %v223, %v230
  %vm242 = vcmp.eq.s32.totalorder %v224, %v230
  %vm243 = vcmp.eq.s32.totalorder %v225, %v230
  %vm244 = vcmp.eq.s32.totalorder %v226, %v230
  %vm245 = vcmp.eq.s32.totalorder %v227, %v230
  %vm246 = vcmp.eq.s32.totalorder %v228, %v230
  %v247 = vsel %vm231, 1, 0
  %v248 = vsel %vm232, 1, 0
  %v249 = vsel %vm233, 1, 0
  %v250 = vsel %vm234, 1, 0
  %v251 = vsel %vm235, 1, 0
  %v252 = vsel %vm236, 1, 0
  %v253 = vsel %vm237, 1, 0
  %v254 = vsel %vm238, 1, 0
  %v255 = vsel %vm239, 1, 0
  %v256 = vsel %vm240, 1, 0
  %v257 = vsel %vm241, 1, 0
  %v258 = vsel %vm242, 1, 0
  %v259 = vsel %vm243, 1, 0
  %v260 = vsel %vm244, 1, 0
  %v261 = vsel %vm245, 1, 0
  %v262 = vsel %vm246, 1, 0
  %v263 = vcvt.s32.f32 %v247
  %v264 = vcvt.s32.f32 %v248
  %v265 = vcvt.s32.f32 %v249
  %v266 = vcvt.s32.f32 %v250
  %v267 = vcvt.s32.f32 %v251
  %v268 = vcvt.s32.f32 %v252
  %v269 = vcvt.s32.f32 %v253
  %v270 = vcvt.s32.f32 %v254
  %v271 = vcvt.s32.f32 %v255
  %v272 = vcvt.s32.f32 %v256
  %v273 = vcvt.s32.f32 %v257
  %v274 = vcvt.s32.f32 %v258
  %v275 = vcvt.s32.f32 %v259
  %v276 = vcvt.s32.f32 %v260
  %v277 = vcvt.s32.f32 %v261
  %v278 = vcvt.s32.f32 %v262
  %vm279 = vcmp.lt.s32.totalorder %v230, 0
  %v280 = vsub.s32 0, %v230
  %v281 = vsel %vm279, %v280, %v230
  %v282 = vshrl.u32 %v281, 3
  %v283 = vand.u32 %v281, 7
  %v284 = vsub.s32 0, %v283
  %v285 = vsel %vm279, %v284, %v283
  %vm286 = vcmp.ne.s32.totalorder %v285, 0
  %vm287 = vcmp.lt.s32.totalorder %v285, 0
  %vm288 = vmand %vm287, %vm286
  %v289 = vadd.s32 %v285, 8
  %v290 = vsel %vm288, %v289, %v285
  %vm291 = vcmp.eq.s32.totalorder %v290, %v21
  %v292 = vsel %vm291, 1, 0
  %v293 = vcvt.s32.f32 %v292
  %vm294 = vcmp.lt.s32.totalorder %v21, 0
  %v295 = vsub.s32 0, %v21
  %v296 = vsel %vm294, %v295, %v21
  %v297 = vshrl.u32 %v296, 4
  %v298 = vand.u32 %v296, 15
  %v299 = vsub.s32 0, %v298
  %v300 = vsel %vm294, %v299, %v298
  %vm301 = vcmp.lt.s32.totalorder %v22, 0
  %v302 = vsub.s32 0, %v22
  %v303 = vsel %vm301, %v302, %v22
  %v304 = vshrl.u32 %v303, 4
  %v305 = vand.u32 %v303, 15
  %v306 = vsub.s32 0, %v305
  %v307 = vsel %vm301, %v306, %v305
  %vm308 = vcmp.lt.s32.totalorder %v23, 0
  %v309 = vsub.s32 0, %v23
  %v310 = vsel %vm308, %v309, %v23
  %v311 = vshrl.u32 %v310, 4
  %v312 = vand.u32 %v310, 15
  %v313 = vsub.s32 0, %v312
  %v314 = vsel %vm308, %v313, %v312
  %vm315 = vcmp.lt.s32.totalorder %v24, 0
  %v316 = vsub.s32 0, %v24
  %v317 = vsel %vm315, %v316, %v24
  %v318 = vshrl.u32 %v317, 4
  %v319 = vand.u32 %v317, 15
  %v320 = vsub.s32 0, %v319
  %v321 = vsel %vm315, %v320, %v319
  %vm322 = vcmp.ne.s32.totalorder %v300, 0
  %vm323 = vcmp.ne.s32.totalorder %v307, 0
  %vm324 = vcmp.ne.s32.totalorder %v314, 0
  %vm325 = vcmp.ne.s32.totalorder %v321, 0
  %vm326 = vcmp.lt.s32.totalorder %v300, 0
  %vm327 = vcmp.lt.s32.totalorder %v307, 0
  %vm328 = vcmp.lt.s32.totalorder %v314, 0
  %vm329 = vcmp.lt.s32.totalorder %v321, 0
  %vm330 = vmand %vm326, %vm322
  %vm331 = vmand %vm327, %vm323
  %vm332 = vmand %vm328, %vm324
  %vm333 = vmand %vm329, %vm325
  %v334 = vadd.s32 %v300, 16
  %v335 = vadd.s32 %v307, 16
  %v336 = vadd.s32 %v314, 16
  %v337 = vadd.s32 %v321, 16
  %v338 = vsel %vm330, %v334, %v300
  %v339 = vsel %vm331, %v335, %v307
  %v340 = vsel %vm332, %v336, %v314
  %v341 = vsel %vm333, %v337, %v321
  %vm342 = vcmp.ne.s32.totalorder %v338, 0
  %vm343 = vcmp.ne.s32.totalorder %v339, 0
  %vm344 = vcmp.ne.s32.totalorder %v340, 0
  %vm345 = vcmp.ne.s32.totalorder %v341, 0
  %v346 = vsel %vm342, 1, 0
  %v347 = vsel %vm343, 1, 0
  %v348 = vsel %vm344, 1, 0
  %v349 = vsel %vm345, 1, 0
  %v350 = vcvt.s32.f32 %v346
  %v351 = vcvt.s32.f32 %v347
  %v352 = vcvt.s32.f32 %v348
  %v353 = vcvt.s32.f32 %v349
  %vm354 = vcmp.ne.s32.totalorder %v338, 15
  %vm355 = vcmp.ne.s32.totalorder %v339, 15
  %vm356 = vcmp.ne.s32.totalorder %v340, 15
  %vm357 = vcmp.ne.s32.totalorder %v341, 15
  %v358 = vsel %vm354, 1, 0
  %v359 = vsel %vm355, 1, 0
  %v360 = vsel %vm356, 1, 0
  %v361 = vsel %vm357, 1, 0
  %v362 = vcvt.s32.f32 %v358
  %v363 = vcvt.s32.f32 %v359
  %v364 = vcvt.s32.f32 %v360
  %v365 = vcvt.s32.f32 %v361
  %vm366 = vcmp.eq.s32.totalorder %v21, 0
  %v367 = vsel %vm366, 1, 0
  %v368 = vcvt.s32.f32 %v367
  %v369 = vld [vmem:[%s2] sm:$0xf]
  %v370 = vld [vmem:[#allocation2] sm:$0x1]
  %v371 = vld [vmem:[%s0] sm:$0xff]
  %v372 = vld [vmem:[%s0 + $0x8] sm:$0xff]
  %v373 = vld [vmem:[%s0 + $0x10] sm:$0xff]
  %v374 = vld [vmem:[%s0 + $0x18] sm:$0xff]
  %v375 = vpack.c.bf16 %v372, %v371
  %v376 = vpack.c.bf16 %v374, %v373
  %v377 = vld [vmem:[%s1] sm:$0xf]
  %v378 = vld [vmem:[%s1 + $0x4] sm:$0xf]
  %v379 = vld [vmem:[%s1 + $0x8] sm:$0xf]
  %v380 = vld [vmem:[%s1 + $0xc] sm:$0xf]
  %v381 = vld [vmem:[%s1 + $0x10] sm:$0xf]
  %v382 = vld [vmem:[%s1 + $0x14] sm:$0xf]
  %v383 = vld [vmem:[%s1 + $0x18] sm:$0xf]
  %v384 = vld [vmem:[%s1 + $0x1c] sm:$0xf]
  %v385 = vld [vmem:[%s1 + $0x20] sm:$0xf]
  %v386 = vld [vmem:[%s1 + $0x24] sm:$0xf]
  %v387 = vld [vmem:[%s1 + $0x28] sm:$0xf]
  %v388 = vld [vmem:[%s1 + $0x2c] sm:$0xf]
  %v389 = vld [vmem:[%s1 + $0x30] sm:$0xf]
  %v390 = vld [vmem:[%s1 + $0x34] sm:$0xf]
  %v391 = vld [vmem:[%s1 + $0x38] sm:$0xf]
  %v392 = vld [vmem:[%s1 + $0x3c] sm:$0xf]
  %v409 = vunpack.c.l.b16 %v377
  %v410 = vunpack.c.l.b16 %v378
  %v411 = vunpack.c.l.b16 %v379
  %v412 = vunpack.c.l.b16 %v380
  %v413 = vunpack.c.l.b16 %v381
  %v414 = vunpack.c.l.b16 %v382
  %v415 = vunpack.c.l.b16 %v383
  %v416 = vunpack.c.l.b16 %v384
  %v417 = vunpack.c.l.b16 %v385
  %v418 = vunpack.c.l.b16 %v386
  %v419 = vunpack.c.l.b16 %v387
  %v420 = vunpack.c.l.b16 %v388
  %v421 = vunpack.c.l.b16 %v389
  %v422 = vunpack.c.l.b16 %v390
  %v423 = vunpack.c.l.b16 %v391
  %v424 = vunpack.c.l.b16 %v392
  %v425 = vpack.c.b16 %v410, %v409
  %v426 = vpack.c.b16 %v412, %v411
  %v427 = vpack.c.b16 %v414, %v413
  %v428 = vpack.c.b16 %v416, %v415
  %v429 = vpack.c.b16 %v418, %v417
  %v430 = vpack.c.b16 %v420, %v419
  %v431 = vpack.c.b16 %v422, %v421
  %v432 = vpack.c.b16 %v424, %v423
  %441 = vmatprep.subr.bf16.mxu0 0
  %442 = vmatpush1.bf16.msra.mxu0 %v425
  %443 = vmatprep.subr.bf16.mxu0 0
  %444 = vmatpush1.bf16.msra.mxu0 %v426
  %445 = vmatprep.subr.bf16.mxu0 0
  %446 = vmatpush1.bf16.msra.mxu0 %v427
  %447 = vmatprep.subr.bf16.mxu0 0
  %448 = vmatpush1.bf16.msra.mxu0 %v428
  %449 = vmatprep.subr.bf16.mxu0 0
  %450 = vmatpush1.bf16.msra.mxu0 %v429
  %451 = vmatprep.subr.bf16.mxu0 0
  %452 = vmatpush1.bf16.msra.mxu0 %v430
  %453 = vmatprep.subr.bf16.mxu0 0
  %454 = vmatpush1.bf16.msra.mxu0 %v431
  %455 = vmatprep.subr.bf16.mxu0 0
  %456 = vmatpush1.bf16.msra.mxu0 %v432
  %457 = vmatprep.subr.bf16.mxu0 0
  %458 = vmatpush1.bf16.msra.mxu0 0
  %459 = vmatprep.subr.bf16.mxu0 0
  %460 = vmatpush1.bf16.msra.mxu0 0
  %461 = vmatprep.subr.bf16.mxu0 0
  %462 = vmatpush1.bf16.msra.mxu0 0
  %463 = vmatprep.subr.bf16.mxu0 0
  %464 = vmatpush1.bf16.msra.mxu0 0
  %465 = vmatprep.subr.bf16.mxu0 0
  %466 = vmatpush1.bf16.msra.mxu0 0
  %467 = vmatprep.subr.bf16.mxu0 0
  %468 = vmatpush1.bf16.msra.mxu0 0
  %469 = vmatprep.subr.bf16.mxu0 0
  %470 = vmatpush1.bf16.msra.mxu0 0
  %471 = vmatprep.subr.bf16.mxu0 0
  %472 = vmatpush1.bf16.msra.mxu0 0
  %473 = vmatprep.mubr.bf16.mxu0 0
  %474 = vmatmul.mubr.bf16.gmra.mrb[0].mxu0 %v375
  %v475 = vpop.f32.mrb[0].mxu0
  %v476 = vadd.f32 0.0, %v475
  %v477 = vpop.f32.mrb[0].mxu0
  %v478 = vpop.f32.mrb[0].mxu0
  %v479 = vadd.f32 0.0, %v478
  %v480 = vpop.f32.mrb[0].mxu0
  %481 = vmatprep.mubr.bf16.mxu0 0
  %482 = vmatmul.mubr.bf16.gmra.mrb[0].mxu0 %v376
  %v483 = vpop.f32.mrb[0].mxu0
  %v484 = vadd.f32 0.0, %v483
  %v485 = vpop.f32.mrb[0].mxu0
  %v486 = vpop.f32.mrb[0].mxu0
  %v487 = vadd.f32 0.0, %v486
  %v488 = vpop.f32.mrb[0].mxu0
  %489 = vdwg.mxu0
  %s490 = scalar_lea.vmem %s1, 64
  %v491 = vld [vmem:[%s490] sm:$0xf]
  %v492 = vld [vmem:[%s490 + $0x4] sm:$0xf]
  %v493 = vld [vmem:[%s490 + $0x8] sm:$0xf]
  %v494 = vld [vmem:[%s490 + $0xc] sm:$0xf]
  %v495 = vld [vmem:[%s490 + $0x10] sm:$0xf]
  %v496 = vld [vmem:[%s490 + $0x14] sm:$0xf]
  %v497 = vld [vmem:[%s490 + $0x18] sm:$0xf]
  %v498 = vld [vmem:[%s490 + $0x1c] sm:$0xf]
  %v499 = vld [vmem:[%s490 + $0x20] sm:$0xf]
  %v500 = vld [vmem:[%s490 + $0x24] sm:$0xf]
  %v501 = vld [vmem:[%s490 + $0x28] sm:$0xf]
  %v502 = vld [vmem:[%s490 + $0x2c] sm:$0xf]
  %v503 = vld [vmem:[%s490 + $0x30] sm:$0xf]
  %v504 = vld [vmem:[%s490 + $0x34] sm:$0xf]
  %v505 = vld [vmem:[%s490 + $0x38] sm:$0xf]
  %v506 = vld [vmem:[%s490 + $0x3c] sm:$0xf]
  %s507 = scalar_lea.vmem %s1, 128
  %v508 = vld [vmem:[%s507] sm:$0xf]
  %v509 = vld [vmem:[%s507 + $0x4] sm:$0xf]
  %v510 = vld [vmem:[%s507 + $0x8] sm:$0xf]
  %v511 = vld [vmem:[%s507 + $0xc] sm:$0xf]
  %v512 = vld [vmem:[%s507 + $0x10] sm:$0xf]
  %v513 = vld [vmem:[%s507 + $0x14] sm:$0xf]
  %v514 = vld [vmem:[%s507 + $0x18] sm:$0xf]
  %v515 = vld [vmem:[%s507 + $0x1c] sm:$0xf]
  %v516 = vld [vmem:[%s507 + $0x20] sm:$0xf]
  %v517 = vld [vmem:[%s507 + $0x24] sm:$0xf]
  %v518 = vld [vmem:[%s507 + $0x28] sm:$0xf]
  %v519 = vld [vmem:[%s507 + $0x2c] sm:$0xf]
  %v520 = vld [vmem:[%s507 + $0x30] sm:$0xf]
  %v521 = vld [vmem:[%s507 + $0x34] sm:$0xf]
  %v522 = vld [vmem:[%s507 + $0x38] sm:$0xf]
  %v523 = vld [vmem:[%s507 + $0x3c] sm:$0xf]
  %v540 = vunpack.c.l.b16 %v508
  %v541 = vunpack.c.l.b16 %v509
  %v542 = vunpack.c.l.b16 %v510
  %v543 = vunpack.c.l.b16 %v511
  %v544 = vunpack.c.l.b16 %v512
  %v545 = vunpack.c.l.b16 %v513
  %v546 = vunpack.c.l.b16 %v514
  %v547 = vunpack.c.l.b16 %v515
  %v548 = vunpack.c.l.b16 %v516
  %v549 = vunpack.c.l.b16 %v517
  %v550 = vunpack.c.l.b16 %v518
  %v551 = vunpack.c.l.b16 %v519
  %v552 = vunpack.c.l.b16 %v520
  %v553 = vunpack.c.l.b16 %v521
  %v554 = vunpack.c.l.b16 %v522
  %v555 = vunpack.c.l.b16 %v523
  %v556 = vpack.c.b16 %v541, %v540
  %v557 = vpack.c.b16 %v543, %v542
  %v558 = vpack.c.b16 %v545, %v544
  %v559 = vpack.c.b16 %v547, %v546
  %v560 = vpack.c.b16 %v549, %v548
  %v561 = vpack.c.b16 %v551, %v550
  %v562 = vpack.c.b16 %v553, %v552
  %v563 = vpack.c.b16 %v555, %v554
  %572 = vmatprep.subr.bf16.mxu0 0
  %573 = vmatpush1.bf16.msra.mxu0 %v556
  %574 = vmatprep.subr.bf16.mxu0 0
  %575 = vmatpush1.bf16.msra.mxu0 %v557
  %576 = vmatprep.subr.bf16.mxu0 0
  %577 = vmatpush1.bf16.msra.mxu0 %v558
  %578 = vmatprep.subr.bf16.mxu0 0
  %579 = vmatpush1.bf16.msra.mxu0 %v559
  %580 = vmatprep.subr.bf16.mxu0 0
  %581 = vmatpush1.bf16.msra.mxu0 %v560
  %582 = vmatprep.subr.bf16.mxu0 0
  %583 = vmatpush1.bf16.msra.mxu0 %v561
  %584 = vmatprep.subr.bf16.mxu0 0
  %585 = vmatpush1.bf16.msra.mxu0 %v562
  %586 = vmatprep.subr.bf16.mxu0 0
  %587 = vmatpush1.bf16.msra.mxu0 %v563
  %588 = vmatprep.subr.bf16.mxu0 0
  %589 = vmatpush1.bf16.msra.mxu0 0
  %590 = vmatprep.subr.bf16.mxu0 0
  %591 = vmatpush1.bf16.msra.mxu0 0
  %592 = vmatprep.subr.bf16.mxu0 0
  %593 = vmatpush1.bf16.msra.mxu0 0
  %594 = vmatprep.subr.bf16.mxu0 0
  %595 = vmatpush1.bf16.msra.mxu0 0
  %596 = vmatprep.subr.bf16.mxu0 0
  %597 = vmatpush1.bf16.msra.mxu0 0
  %598 = vmatprep.subr.bf16.mxu0 0
  %599 = vmatpush1.bf16.msra.mxu0 0
  %600 = vmatprep.subr.bf16.mxu0 0
  %601 = vmatpush1.bf16.msra.mxu0 0
  %602 = vmatprep.subr.bf16.mxu0 0
  %603 = vmatpush1.bf16.msra.mxu0 0
  %604 = vmatprep.mubr.bf16.mxu0 0
  %605 = vmatmul.mubr.bf16.gmra.mrb[0].mxu0 %v375
  %v606 = vpop.f32.mrb[0].mxu0
  %v607 = vadd.f32 0.0, %v606
  %v608 = vpop.f32.mrb[0].mxu0
  %v609 = vpop.f32.mrb[0].mxu0
  %v610 = vadd.f32 0.0, %v609
  %v611 = vpop.f32.mrb[0].mxu0
  %612 = vmatprep.mubr.bf16.mxu0 0
  %613 = vmatmul.mubr.bf16.gmra.mrb[0].mxu0 %v376
  %v614 = vpop.f32.mrb[0].mxu0
  %v615 = vadd.f32 0.0, %v614
  %v616 = vpop.f32.mrb[0].mxu0
  %v617 = vpop.f32.mrb[0].mxu0
  %v618 = vadd.f32 0.0, %v617
  %v619 = vpop.f32.mrb[0].mxu0
  %620 = vdwg.mxu0
  %v621 = vrot.slane %v476, 7
  %v622 = vrot.slane %v479, 7
  %v623 = vrot.slane %v484, 7
  %v624 = vrot.slane %v487, 7
  %vm625 = vcmp.lt.s32.totalorder %v21, 1
  %v626 = vsel %vm625, %v623, %v624
  %v627 = vsel %vm625, %v622, %v623
  %v628 = vsel %vm625, %v621, %v622
  %v629 = vsel %vm625, %v624, %v621
  %v630 = vmul.f32 %v629, %v350
  %v631 = vmul.f32 %v628, %v351
  %v632 = vmul.f32 %v627, %v352
  %v633 = vmul.f32 %v626, %v353
  %v650 = vunpack.c.l.b16 %v491
  %v651 = vunpack.c.l.b16 %v492
  %v652 = vunpack.c.l.b16 %v493
  %v653 = vunpack.c.l.b16 %v494
  %v654 = vunpack.c.l.b16 %v495
  %v655 = vunpack.c.l.b16 %v496
  %v656 = vunpack.c.l.b16 %v497
  %v657 = vunpack.c.l.b16 %v498
  %v658 = vunpack.c.l.b16 %v499
  %v659 = vunpack.c.l.b16 %v500
  %v660 = vunpack.c.l.b16 %v501
  %v661 = vunpack.c.l.b16 %v502
  %v662 = vunpack.c.l.b16 %v503
  %v663 = vunpack.c.l.b16 %v504
  %v664 = vunpack.c.l.b16 %v505
  %v665 = vunpack.c.l.b16 %v506
  %v666 = vpack.c.b16 %v651, %v650
  %v667 = vpack.c.b16 %v653, %v652
  %v668 = vpack.c.b16 %v655, %v654
  %v669 = vpack.c.b16 %v657, %v656
  %v670 = vpack.c.b16 %v659, %v658
  %v671 = vpack.c.b16 %v661, %v660
  %v672 = vpack.c.b16 %v663, %v662
  %v673 = vpack.c.b16 %v665, %v664
  %682 = vmatprep.subr.bf16.mxu0 0
  %683 = vmatpush1.bf16.msra.mxu0 %v666
  %684 = vmatprep.subr.bf16.mxu0 0
  %685 = vmatpush1.bf16.msra.mxu0 %v667
  %686 = vmatprep.subr.bf16.mxu0 0
  %687 = vmatpush1.bf16.msra.mxu0 %v668
  %688 = vmatprep.subr.bf16.mxu0 0
  %689 = vmatpush1.bf16.msra.mxu0 %v669
  %690 = vmatprep.subr.bf16.mxu0 0
  %691 = vmatpush1.bf16.msra.mxu0 %v670
  %692 = vmatprep.subr.bf16.mxu0 0
  %693 = vmatpush1.bf16.msra.mxu0 %v671
  %694 = vmatprep.subr.bf16.mxu0 0
  %695 = vmatpush1.bf16.msra.mxu0 %v672
  %696 = vmatprep.subr.bf16.mxu0 0
  %697 = vmatpush1.bf16.msra.mxu0 %v673
  %698 = vmatprep.subr.bf16.mxu0 0
  %699 = vmatpush1.bf16.msra.mxu0 0
  %700 = vmatprep.subr.bf16.mxu0 0
  %701 = vmatpush1.bf16.msra.mxu0 0
  %702 = vmatprep.subr.bf16.mxu0 0
  %703 = vmatpush1.bf16.msra.mxu0 0
  %704 = vmatprep.subr.bf16.mxu0 0
  %705 = vmatpush1.bf16.msra.mxu0 0
  %706 = vmatprep.subr.bf16.mxu0 0
  %707 = vmatpush1.bf16.msra.mxu0 0
  %708 = vmatprep.subr.bf16.mxu0 0
  %709 = vmatpush1.bf16.msra.mxu0 0
  %710 = vmatprep.subr.bf16.mxu0 0
  %711 = vmatpush1.bf16.msra.mxu0 0
  %712 = vmatprep.subr.bf16.mxu0 0
  %713 = vmatpush1.bf16.msra.mxu0 0
  %714 = vmatprep.mubr.bf16.mxu0 0
  %715 = vmatmul.mubr.bf16.gmra.mrb[0].mxu0 %v375
  %v716 = vpop.f32.mrb[0].mxu0
  %v717 = vadd.f32 %v630, %v716
  %v718 = vpop.f32.mrb[0].mxu0
  %v719 = vpop.f32.mrb[0].mxu0
  %v720 = vadd.f32 %v631, %v719
  %v721 = vpop.f32.mrb[0].mxu0
  %722 = vmatprep.mubr.bf16.mxu0 0
  %723 = vmatmul.mubr.bf16.gmra.mrb[0].mxu0 %v376
  %v724 = vpop.f32.mrb[0].mxu0
  %v725 = vadd.f32 %v632, %v724
  %v726 = vpop.f32.mrb[0].mxu0
  %v727 = vpop.f32.mrb[0].mxu0
  %v728 = vadd.f32 %v633, %v727
  %v729 = vpop.f32.mrb[0].mxu0
  %730 = vdwg.mxu0
  %v731 = vrot.slane %v607, 1
  %v732 = vrot.slane %v610, 1
  %v733 = vrot.slane %v615, 1
  %v734 = vrot.slane %v618, 1
  %vm735 = vcmp.lt.s32.totalorder %v21, 7
  %v736 = vsel %vm735, %v733, %v734
  %v737 = vsel %vm735, %v732, %v733
  %v738 = vsel %vm735, %v731, %v732
  %v739 = vsel %vm735, %v734, %v731
  %v740 = vmul.f32 %v738, %v362
  %v741 = vmul.f32 %v737, %v363
  %v742 = vmul.f32 %v736, %v364
  %v743 = vmul.f32 %v739, %v365
  %v744 = vadd.f32 %v717, %v740
  %v745 = vadd.f32 %v720, %v741
  %v746 = vadd.f32 %v725, %v742
  %v747 = vadd.f32 %v728, %v743
  %v748 = vadd.f32 %v744, %v745
  %v749 = vadd.f32 %v748, %v746
  %v750 = vadd.f32 %v749, %v747
  %v751 = vrot.slane %v750, 4
  %v752 = vadd.f32 %v750, %v751
  %v753 = vrot.slane %v752, 2
  %v754 = vadd.f32 %v752, %v753
  %v755 = vrot.slane %v754, 1
  %v756 = vadd.f32 %v754, %v755
  %v757 = vmul.f32 %v744, %v744
  %v758 = vmul.f32 %v745, %v745
  %v759 = vmul.f32 %v746, %v746
  %v760 = vmul.f32 %v747, %v747
  %v761 = vadd.f32 %v757, %v758
  %v762 = vadd.f32 %v761, %v759
  %v763 = vadd.f32 %v762, %v760
  %v764 = vrot.slane %v763, 4
  %v765 = vadd.f32 %v763, %v764
  %v766 = vrot.slane %v765, 2
  %v767 = vadd.f32 %v765, %v766
  %v768 = vrot.slane %v767, 1
  %v769 = vadd.f32 %v767, %v768
  %v770 = vmul.f32 %v368, %v756
  %v771 = vsub.f32 1.0, %v368
  %v772 = vmul.f32 %v771, %v769
  %v773 = vadd.f32 %v770, %v772
  %774 = vmatprep.subr.mxu0 0.0
  %775 = vmatpush1.msra.mxu0 %v263
  %776 = vmatprep.subr.mxu0 0.0
  %777 = vmatpush1.msra.mxu0 %v264
  %778 = vmatprep.subr.mxu0 0.0
  %779 = vmatpush1.msra.mxu0 %v265
  %780 = vmatprep.subr.mxu0 0.0
  %781 = vmatpush1.msra.mxu0 %v266
  %782 = vmatprep.subr.mxu0 0.0
  %783 = vmatpush1.msra.mxu0 %v267
  %784 = vmatprep.subr.mxu0 0.0
  %785 = vmatpush1.msra.mxu0 %v268
  %786 = vmatprep.subr.mxu0 0.0
  %787 = vmatpush1.msra.mxu0 %v269
  %788 = vmatprep.subr.mxu0 0.0
  %789 = vmatpush1.msra.mxu0 %v270
  %790 = vmatprep.subr.mxu0 0.0
  %791 = vmatpush1.msra.mxu0 %v271
  %792 = vmatprep.subr.mxu0 0.0
  %793 = vmatpush1.msra.mxu0 %v272
  %794 = vmatprep.subr.mxu0 0.0
  %795 = vmatpush1.msra.mxu0 %v273
  %796 = vmatprep.subr.mxu0 0.0
  %797 = vmatpush1.msra.mxu0 %v274
  %798 = vmatprep.subr.mxu0 0.0
  %799 = vmatpush1.msra.mxu0 %v275
  %800 = vmatprep.subr.mxu0 0.0
  %801 = vmatpush1.msra.mxu0 %v276
  %802 = vmatprep.subr.mxu0 0.0
  %803 = vmatpush1.msra.mxu0 %v277
  %804 = vmatprep.subr.mxu0 0.0
  %805 = vmatpush1.msra.mxu0 %v278
  %806 = vmatprep.subr.mxu0 0.0
  %807 = vmatpush1.msra.mxu0 0.0
  %808 = vmatprep.subr.mxu0 0.0
  %809 = vmatpush1.msra.mxu0 0.0
  %810 = vmatprep.subr.mxu0 0.0
  %811 = vmatpush1.msra.mxu0 0.0
  %812 = vmatprep.subr.mxu0 0.0
  %813 = vmatpush1.msra.mxu0 0.0
  %814 = vmatprep.subr.mxu0 0.0
  %815 = vmatpush1.msra.mxu0 0.0
  %816 = vmatprep.subr.mxu0 0.0
  %817 = vmatpush1.msra.mxu0 0.0
  %818 = vmatprep.subr.mxu0 0.0
  %819 = vmatpush1.msra.mxu0 0.0
  %820 = vmatprep.subr.mxu0 0.0
  %821 = vmatpush1.msra.mxu0 0.0
  %822 = vmatprep.subr.mxu0 0.0
  %823 = vmatpush1.msra.mxu0 0.0
  %824 = vmatprep.subr.mxu0 0.0
  %825 = vmatpush1.msra.mxu0 0.0
  %826 = vmatprep.subr.mxu0 0.0
  %827 = vmatpush1.msra.mxu0 0.0
  %828 = vmatprep.subr.mxu0 0.0
  %829 = vmatpush1.msra.mxu0 0.0
  %830 = vmatprep.subr.mxu0 0.0
  %831 = vmatpush1.msra.mxu0 0.0
  %832 = vmatprep.subr.mxu0 0.0
  %833 = vmatpush1.msra.mxu0 0.0
  %834 = vmatprep.subr.mxu0 0.0
  %835 = vmatpush1.msra.mxu0 0.0
  %836 = vmatprep.subr.mxu0 0.0
  %837 = vmatpush1.msra.mxu0 0.0
  %838 = vmatprep.mubr.f32.mxu0 0.0
  %839 = vmatmul.mubr.f32.gmra.mrb[0].mxu0 %v773
  %v840 = vpop.f32.mrb[0].mxu0
  %v841 = vadd.f32 0.0, %v840
  %v842 = vpop.f32.mrb[0].mxu0
  %843 = vdwg.mxu0
  %v844 = vmul.f32 %v841, 0.001953125
  %v845 = vmul.f32 %v844, %v844
  %v847 = vrot.slane %v845, 7
  %v849 = vsub.f32 %v844, %v847
  %v850 = vadd.f32 %v849, 1e-05
  %v851 = vrsqrt.pop %v850
  %v853 = vrot.slane %v851, 1
  %v855 = vmul.f32 %v369, %v853
  %v856 = vmul.f32 %v844, %v855
  %v858 = vrot.slane %v856, 7
  %v860 = vsub.f32 %v369, %v858
  %v861 = vlaneseq
  %v862 = vshrl.u32 %v861, 7
  %v863 = vsub.s32 0, %v862
  %v864 = vrot.slane %v855, %v863
  %v865 = vmul.f32 %v368, %v864
  %v866 = vlaneseq
  %v867 = vshrl.u32 %v866, 7
  %v868 = vsub.s32 1, %v867
  %v869 = vrot.slane %v860, %v868
  %v870 = vmul.f32 %v771, %v869
  %v871 = vadd.f32 %v865, %v870
  %vm872 = vcmask 64512
  %v874 = vsel %vm872, %v871, 0
  %876 = vmatprep.subr.mxu0 0.0
  %877 = vmatpush1.msra.mxu0 %v293
  %878 = vmatprep.subr.mxu0 0.0
  %879 = vmatpush1.msra.mxu0 0.0
  %880 = vmatprep.subr.mxu0 0.0
  %881 = vmatpush1.msra.mxu0 0.0
  %882 = vmatprep.subr.mxu0 0.0
  %883 = vmatpush1.msra.mxu0 0.0
  %884 = vmatprep.subr.mxu0 0.0
  %885 = vmatpush1.msra.mxu0 0.0
  %886 = vmatprep.subr.mxu0 0.0
  %887 = vmatpush1.msra.mxu0 0.0
  %888 = vmatprep.subr.mxu0 0.0
  %889 = vmatpush1.msra.mxu0 0.0
  %890 = vmatprep.subr.mxu0 0.0
  %891 = vmatpush1.msra.mxu0 0.0
  %892 = vmatprep.subr.mxu0 0.0
  %893 = vmatpush1.msra.mxu0 0.0
  %894 = vmatprep.subr.mxu0 0.0
  %895 = vmatpush1.msra.mxu0 0.0
  %896 = vmatprep.subr.mxu0 0.0
  %897 = vmatpush1.msra.mxu0 0.0
  %898 = vmatprep.subr.mxu0 0.0
  %899 = vmatpush1.msra.mxu0 0.0
  %900 = vmatprep.subr.mxu0 0.0
  %901 = vmatpush1.msra.mxu0 0.0
  %902 = vmatprep.subr.mxu0 0.0
  %903 = vmatpush1.msra.mxu0 0.0
  %904 = vmatprep.subr.mxu0 0.0
  %905 = vmatpush1.msra.mxu0 0.0
  %906 = vmatprep.subr.mxu0 0.0
  %907 = vmatpush1.msra.mxu0 0.0
  %908 = vmatprep.subr.mxu0 0.0
  %909 = vmatpush1.msra.mxu0 0.0
  %910 = vmatprep.subr.mxu0 0.0
  %911 = vmatpush1.msra.mxu0 0.0
  %912 = vmatprep.subr.mxu0 0.0
  %913 = vmatpush1.msra.mxu0 0.0
  %914 = vmatprep.subr.mxu0 0.0
  %915 = vmatpush1.msra.mxu0 0.0
  %916 = vmatprep.subr.mxu0 0.0
  %917 = vmatpush1.msra.mxu0 0.0
  %918 = vmatprep.subr.mxu0 0.0
  %919 = vmatpush1.msra.mxu0 0.0
  %920 = vmatprep.subr.mxu0 0.0
  %921 = vmatpush1.msra.mxu0 0.0
  %922 = vmatprep.subr.mxu0 0.0
  %923 = vmatpush1.msra.mxu0 0.0
  %924 = vmatprep.subr.mxu0 0.0
  %925 = vmatpush1.msra.mxu0 0.0
  %926 = vmatprep.subr.mxu0 0.0
  %927 = vmatpush1.msra.mxu0 0.0
  %928 = vmatprep.subr.mxu0 0.0
  %929 = vmatpush1.msra.mxu0 0.0
  %930 = vmatprep.subr.mxu0 0.0
  %931 = vmatpush1.msra.mxu0 0.0
  %932 = vmatprep.subr.mxu0 0.0
  %933 = vmatpush1.msra.mxu0 0.0
  %934 = vmatprep.subr.mxu0 0.0
  %935 = vmatpush1.msra.mxu0 0.0
  %936 = vmatprep.subr.mxu0 0.0
  %937 = vmatpush1.msra.mxu0 0.0
  %938 = vmatprep.subr.mxu0 0.0
  %939 = vmatpush1.msra.mxu0 0.0
  %940 = vmatprep.mubr.f32.mxu0 0.0
  %941 = vmatmul.mubr.f32.gmra.mrb[0].mxu0 %v874
  %v942 = vpop.f32.mrb[0].mxu0
  %v943 = vadd.f32 0.0, %v942
  %v944 = vpop.f32.mrb[0].mxu0
  %945 = vdwg.mxu0
  %v946 = vlaneseq
  %v947 = vshrl.u32 %v946, 7
  %v948 = vsub.s32 0, %v947
  %v949 = vrot.slane %v943, %v948
  %v950 = vmul.f32 %v744, %v949
  %v951 = vmul.f32 %v745, %v949
  %v952 = vmul.f32 %v746, %v949
  %v953 = vmul.f32 %v747, %v949
  %v954 = vlaneseq
  %v955 = vshrl.u32 %v954, 7
  %v956 = vsub.s32 1, %v955
  %v957 = vrot.slane %v943, %v956
  %v958 = vadd.f32 %v950, %v957
  %v959 = vadd.f32 %v951, %v957
  %v960 = vadd.f32 %v952, %v957
  %v961 = vadd.f32 %v953, %v957
  %vm962 = vcmp.ge.f32.partialorder %v958, 0.0
  %vm963 = vcmp.ge.f32.partialorder %v959, 0.0
  %vm964 = vcmp.ge.f32.partialorder %v960, 0.0
  %vm965 = vcmp.ge.f32.partialorder %v961, 0.0
  %v967 = vlaneseq
  %v968 = vshrl.u32 %v967, 7
  %v969 = vsub.s32 0, %v968
  %v970 = vrot.slane %v370, %v969
  %971 = vset.pattern.permute.xlu0 0
  %972 = vperm.xlu0 %971, %v970
  %v973 = vpop.permute.xlu0 %972
  %v975 = vmul.f32 %v958, %v973
  %v976 = vmul.f32 %v959, %v973
  %v977 = vmul.f32 %v960, %v973
  %v978 = vmul.f32 %v961, %v973
  %v979 = vsel %vm962, %v958, %v975
  %v980 = vsel %vm963, %v959, %v976
  %v981 = vsel %vm964, %v960, %v977
  %v982 = vsel %vm965, %v961, %v978
  %v983 = vpack.c.bf16 %v980, %v979
  %v984 = vpack.c.bf16 %v982, %v981
  %s985 = scalar_lea.vmem %s1, 192
  %v986 = vld [vmem:[%s985] sm:$0xf]
  %v987 = vld [vmem:[%s985 + $0x4] sm:$0xf]
  %v988 = vld [vmem:[%s985 + $0x8] sm:$0xf]
  %v989 = vld [vmem:[%s985 + $0xc] sm:$0xf]
  %v990 = vld [vmem:[%s985 + $0x10] sm:$0xf]
  %v991 = vld [vmem:[%s985 + $0x14] sm:$0xf]
  %v992 = vld [vmem:[%s985 + $0x18] sm:$0xf]
  %v993 = vld [vmem:[%s985 + $0x1c] sm:$0xf]
  %v994 = vld [vmem:[%s985 + $0x20] sm:$0xf]
  %v995 = vld [vmem:[%s985 + $0x24] sm:$0xf]
  %v996 = vld [vmem:[%s985 + $0x28] sm:$0xf]
  %v997 = vld [vmem:[%s985 + $0x2c] sm:$0xf]
  %v998 = vld [vmem:[%s985 + $0x30] sm:$0xf]
  %v999 = vld [vmem:[%s985 + $0x34] sm:$0xf]
  %v1000 = vld [vmem:[%s985 + $0x38] sm:$0xf]
  %v1001 = vld [vmem:[%s985 + $0x3c] sm:$0xf]
  %v1018 = vunpack.c.l.b16 %v986
  %v1019 = vunpack.c.l.b16 %v987
  %v1020 = vunpack.c.l.b16 %v988
  %v1021 = vunpack.c.l.b16 %v989
  %v1022 = vunpack.c.l.b16 %v990
  %v1023 = vunpack.c.l.b16 %v991
  %v1024 = vunpack.c.l.b16 %v992
  %v1025 = vunpack.c.l.b16 %v993
  %v1026 = vunpack.c.l.b16 %v994
  %v1027 = vunpack.c.l.b16 %v995
  %v1028 = vunpack.c.l.b16 %v996
  %v1029 = vunpack.c.l.b16 %v997
  %v1030 = vunpack.c.l.b16 %v998
  %v1031 = vunpack.c.l.b16 %v999
  %v1032 = vunpack.c.l.b16 %v1000
  %v1033 = vunpack.c.l.b16 %v1001
  %v1034 = vpack.c.b16 %v1019, %v1018
  %v1035 = vpack.c.b16 %v1021, %v1020
  %v1036 = vpack.c.b16 %v1023, %v1022
  %v1037 = vpack.c.b16 %v1025, %v1024
  %v1038 = vpack.c.b16 %v1027, %v1026
  %v1039 = vpack.c.b16 %v1029, %v1028
  %v1040 = vpack.c.b16 %v1031, %v1030
  %v1041 = vpack.c.b16 %v1033, %v1032
  %1050 = vmatprep.subr.bf16.mxu0 0
  %1051 = vmatpush1.bf16.msra.mxu0 %v1034
  %1052 = vmatprep.subr.bf16.mxu0 0
  %1053 = vmatpush1.bf16.msra.mxu0 %v1035
  %1054 = vmatprep.subr.bf16.mxu0 0
  %1055 = vmatpush1.bf16.msra.mxu0 %v1036
  %1056 = vmatprep.subr.bf16.mxu0 0
  %1057 = vmatpush1.bf16.msra.mxu0 %v1037
  %1058 = vmatprep.subr.bf16.mxu0 0
  %1059 = vmatpush1.bf16.msra.mxu0 %v1038
  %1060 = vmatprep.subr.bf16.mxu0 0
  %1061 = vmatpush1.bf16.msra.mxu0 %v1039
  %1062 = vmatprep.subr.bf16.mxu0 0
  %1063 = vmatpush1.bf16.msra.mxu0 %v1040
  %1064 = vmatprep.subr.bf16.mxu0 0
  %1065 = vmatpush1.bf16.msra.mxu0 %v1041
  %1066 = vmatprep.subr.bf16.mxu0 0
  %1067 = vmatpush1.bf16.msra.mxu0 0
  %1068 = vmatprep.subr.bf16.mxu0 0
  %1069 = vmatpush1.bf16.msra.mxu0 0
  %1070 = vmatprep.subr.bf16.mxu0 0
  %1071 = vmatpush1.bf16.msra.mxu0 0
  %1072 = vmatprep.subr.bf16.mxu0 0
  %1073 = vmatpush1.bf16.msra.mxu0 0
  %1074 = vmatprep.subr.bf16.mxu0 0
  %1075 = vmatpush1.bf16.msra.mxu0 0
  %1076 = vmatprep.subr.bf16.mxu0 0
  %1077 = vmatpush1.bf16.msra.mxu0 0
  %1078 = vmatprep.subr.bf16.mxu0 0
  %1079 = vmatpush1.bf16.msra.mxu0 0
  %1080 = vmatprep.subr.bf16.mxu0 0
  %1081 = vmatpush1.bf16.msra.mxu0 0
  %1082 = vmatprep.mubr.bf16.mxu0 0
  %1083 = vmatmul.mubr.bf16.gmra.mrb[0].mxu0 %v983
  %v1084 = vpop.f32.mrb[0].mxu0
  %v1085 = vadd.f32 0.0, %v1084
  %v1086 = vpop.f32.mrb[0].mxu0
  %v1087 = vpop.f32.mrb[0].mxu0
  %v1088 = vadd.f32 0.0, %v1087
  %v1089 = vpop.f32.mrb[0].mxu0
  %1090 = vmatprep.mubr.bf16.mxu0 0
  %1091 = vmatmul.mubr.bf16.gmra.mrb[0].mxu0 %v984
  %v1092 = vpop.f32.mrb[0].mxu0
  %v1093 = vadd.f32 0.0, %v1092
  %v1094 = vpop.f32.mrb[0].mxu0
  %v1095 = vpop.f32.mrb[0].mxu0
  %v1096 = vadd.f32 0.0, %v1095
  %v1097 = vpop.f32.mrb[0].mxu0
  %1098 = vdwg.mxu0
  %s1099 = scalar_lea.vmem %s1, 256
  %v1100 = vld [vmem:[%s1099] sm:$0xf]
  %v1101 = vld [vmem:[%s1099 + $0x4] sm:$0xf]
  %v1102 = vld [vmem:[%s1099 + $0x8] sm:$0xf]
  %v1103 = vld [vmem:[%s1099 + $0xc] sm:$0xf]
  %v1104 = vld [vmem:[%s1099 + $0x10] sm:$0xf]
  %v1105 = vld [vmem:[%s1099 + $0x14] sm:$0xf]
  %v1106 = vld [vmem:[%s1099 + $0x18] sm:$0xf]
  %v1107 = vld [vmem:[%s1099 + $0x1c] sm:$0xf]
  %v1108 = vld [vmem:[%s1099 + $0x20] sm:$0xf]
  %v1109 = vld [vmem:[%s1099 + $0x24] sm:$0xf]
  %v1110 = vld [vmem:[%s1099 + $0x28] sm:$0xf]
  %v1111 = vld [vmem:[%s1099 + $0x2c] sm:$0xf]
  %v1112 = vld [vmem:[%s1099 + $0x30] sm:$0xf]
  %v1113 = vld [vmem:[%s1099 + $0x34] sm:$0xf]
  %v1114 = vld [vmem:[%s1099 + $0x38] sm:$0xf]
  %v1115 = vld [vmem:[%s1099 + $0x3c] sm:$0xf]
  %s1116 = scalar_lea.vmem %s1, 320
  %v1117 = vld [vmem:[%s1116] sm:$0xf]
  %v1118 = vld [vmem:[%s1116 + $0x4] sm:$0xf]
  %v1119 = vld [vmem:[%s1116 + $0x8] sm:$0xf]
  %v1120 = vld [vmem:[%s1116 + $0xc] sm:$0xf]
  %v1121 = vld [vmem:[%s1116 + $0x10] sm:$0xf]
  %v1122 = vld [vmem:[%s1116 + $0x14] sm:$0xf]
  %v1123 = vld [vmem:[%s1116 + $0x18] sm:$0xf]
  %v1124 = vld [vmem:[%s1116 + $0x1c] sm:$0xf]
  %v1125 = vld [vmem:[%s1116 + $0x20] sm:$0xf]
  %v1126 = vld [vmem:[%s1116 + $0x24] sm:$0xf]
  %v1127 = vld [vmem:[%s1116 + $0x28] sm:$0xf]
  %v1128 = vld [vmem:[%s1116 + $0x2c] sm:$0xf]
  %v1129 = vld [vmem:[%s1116 + $0x30] sm:$0xf]
  %v1130 = vld [vmem:[%s1116 + $0x34] sm:$0xf]
  %v1131 = vld [vmem:[%s1116 + $0x38] sm:$0xf]
  %v1132 = vld [vmem:[%s1116 + $0x3c] sm:$0xf]
  %v1149 = vunpack.c.l.b16 %v1117
  %v1150 = vunpack.c.l.b16 %v1118
  %v1151 = vunpack.c.l.b16 %v1119
  %v1152 = vunpack.c.l.b16 %v1120
  %v1153 = vunpack.c.l.b16 %v1121
  %v1154 = vunpack.c.l.b16 %v1122
  %v1155 = vunpack.c.l.b16 %v1123
  %v1156 = vunpack.c.l.b16 %v1124
  %v1157 = vunpack.c.l.b16 %v1125
  %v1158 = vunpack.c.l.b16 %v1126
  %v1159 = vunpack.c.l.b16 %v1127
  %v1160 = vunpack.c.l.b16 %v1128
  %v1161 = vunpack.c.l.b16 %v1129
  %v1162 = vunpack.c.l.b16 %v1130
  %v1163 = vunpack.c.l.b16 %v1131
  %v1164 = vunpack.c.l.b16 %v1132
  %v1165 = vpack.c.b16 %v1150, %v1149
  %v1166 = vpack.c.b16 %v1152, %v1151
  %v1167 = vpack.c.b16 %v1154, %v1153
  %v1168 = vpack.c.b16 %v1156, %v1155
  %v1169 = vpack.c.b16 %v1158, %v1157
  %v1170 = vpack.c.b16 %v1160, %v1159
  %v1171 = vpack.c.b16 %v1162, %v1161
  %v1172 = vpack.c.b16 %v1164, %v1163
  %1181 = vmatprep.subr.bf16.mxu0 0
  %1182 = vmatpush1.bf16.msra.mxu0 %v1165
  %1183 = vmatprep.subr.bf16.mxu0 0
  %1184 = vmatpush1.bf16.msra.mxu0 %v1166
  %1185 = vmatprep.subr.bf16.mxu0 0
  %1186 = vmatpush1.bf16.msra.mxu0 %v1167
  %1187 = vmatprep.subr.bf16.mxu0 0
  %1188 = vmatpush1.bf16.msra.mxu0 %v1168
  %1189 = vmatprep.subr.bf16.mxu0 0
  %1190 = vmatpush1.bf16.msra.mxu0 %v1169
  %1191 = vmatprep.subr.bf16.mxu0 0
  %1192 = vmatpush1.bf16.msra.mxu0 %v1170
  %1193 = vmatprep.subr.bf16.mxu0 0
  %1194 = vmatpush1.bf16.msra.mxu0 %v1171
  %1195 = vmatprep.subr.bf16.mxu0 0
  %1196 = vmatpush1.bf16.msra.mxu0 %v1172
  %1197 = vmatprep.subr.bf16.mxu0 0
  %1198 = vmatpush1.bf16.msra.mxu0 0
  %1199 = vmatprep.subr.bf16.mxu0 0
  %1200 = vmatpush1.bf16.msra.mxu0 0
  %1201 = vmatprep.subr.bf16.mxu0 0
  %1202 = vmatpush1.bf16.msra.mxu0 0
  %1203 = vmatprep.subr.bf16.mxu0 0
  %1204 = vmatpush1.bf16.msra.mxu0 0
  %1205 = vmatprep.subr.bf16.mxu0 0
  %1206 = vmatpush1.bf16.msra.mxu0 0
  %1207 = vmatprep.subr.bf16.mxu0 0
  %1208 = vmatpush1.bf16.msra.mxu0 0
  %1209 = vmatprep.subr.bf16.mxu0 0
  %1210 = vmatpush1.bf16.msra.mxu0 0
  %1211 = vmatprep.subr.bf16.mxu0 0
  %1212 = vmatpush1.bf16.msra.mxu0 0
  %1213 = vmatprep.mubr.bf16.mxu0 0
  %1214 = vmatmul.mubr.bf16.gmra.mrb[0].mxu0 %v983
  %v1215 = vpop.f32.mrb[0].mxu0
  %v1216 = vadd.f32 0.0, %v1215
  %v1217 = vpop.f32.mrb[0].mxu0
  %v1218 = vpop.f32.mrb[0].mxu0
  %v1219 = vadd.f32 0.0, %v1218
  %v1220 = vpop.f32.mrb[0].mxu0
  %1221 = vmatprep.mubr.bf16.mxu0 0
  %1222 = vmatmul.mubr.bf16.gmra.mrb[0].mxu0 %v984
  %v1223 = vpop.f32.mrb[0].mxu0
  %v1224 = vadd.f32 0.0, %v1223
  %v1225 = vpop.f32.mrb[0].mxu0
  %v1226 = vpop.f32.mrb[0].mxu0
  %v1227 = vadd.f32 0.0, %v1226
  %v1228 = vpop.f32.mrb[0].mxu0
  %1229 = vdwg.mxu0
  %v1230 = vrot.slane %v1085, 7
  %v1231 = vrot.slane %v1088, 7
  %v1232 = vrot.slane %v1093, 7
  %v1233 = vrot.slane %v1096, 7
  %v1234 = vsel %vm625, %v1232, %v1233
  %v1235 = vsel %vm625, %v1231, %v1232
  %v1236 = vsel %vm625, %v1230, %v1231
  %v1237 = vsel %vm625, %v1233, %v1230
  %v1238 = vmul.f32 %v1237, %v350
  %v1239 = vmul.f32 %v1236, %v351
  %v1240 = vmul.f32 %v1235, %v352
  %v1241 = vmul.f32 %v1234, %v353
  %v1258 = vunpack.c.l.b16 %v1100
  %v1259 = vunpack.c.l.b16 %v1101
  %v1260 = vunpack.c.l.b16 %v1102
  %v1261 = vunpack.c.l.b16 %v1103
  %v1262 = vunpack.c.l.b16 %v1104
  %v1263 = vunpack.c.l.b16 %v1105
  %v1264 = vunpack.c.l.b16 %v1106
  %v1265 = vunpack.c.l.b16 %v1107
  %v1266 = vunpack.c.l.b16 %v1108
  %v1267 = vunpack.c.l.b16 %v1109
  %v1268 = vunpack.c.l.b16 %v1110
  %v1269 = vunpack.c.l.b16 %v1111
  %v1270 = vunpack.c.l.b16 %v1112
  %v1271 = vunpack.c.l.b16 %v1113
  %v1272 = vunpack.c.l.b16 %v1114
  %v1273 = vunpack.c.l.b16 %v1115
  %v1274 = vpack.c.b16 %v1259, %v1258
  %v1275 = vpack.c.b16 %v1261, %v1260
  %v1276 = vpack.c.b16 %v1263, %v1262
  %v1277 = vpack.c.b16 %v1265, %v1264
  %v1278 = vpack.c.b16 %v1267, %v1266
  %v1279 = vpack.c.b16 %v1269, %v1268
  %v1280 = vpack.c.b16 %v1271, %v1270
  %v1281 = vpack.c.b16 %v1273, %v1272
  %1290 = vmatprep.subr.bf16.mxu0 0
  %1291 = vmatpush1.bf16.msra.mxu0 %v1274
  %1292 = vmatprep.subr.bf16.mxu0 0
  %1293 = vmatpush1.bf16.msra.mxu0 %v1275
  %1294 = vmatprep.subr.bf16.mxu0 0
  %1295 = vmatpush1.bf16.msra.mxu0 %v1276
  %1296 = vmatprep.subr.bf16.mxu0 0
  %1297 = vmatpush1.bf16.msra.mxu0 %v1277
  %1298 = vmatprep.subr.bf16.mxu0 0
  %1299 = vmatpush1.bf16.msra.mxu0 %v1278
  %1300 = vmatprep.subr.bf16.mxu0 0
  %1301 = vmatpush1.bf16.msra.mxu0 %v1279
  %1302 = vmatprep.subr.bf16.mxu0 0
  %1303 = vmatpush1.bf16.msra.mxu0 %v1280
  %1304 = vmatprep.subr.bf16.mxu0 0
  %1305 = vmatpush1.bf16.msra.mxu0 %v1281
  %1306 = vmatprep.subr.bf16.mxu0 0
  %1307 = vmatpush1.bf16.msra.mxu0 0
  %1308 = vmatprep.subr.bf16.mxu0 0
  %1309 = vmatpush1.bf16.msra.mxu0 0
  %1310 = vmatprep.subr.bf16.mxu0 0
  %1311 = vmatpush1.bf16.msra.mxu0 0
  %1312 = vmatprep.subr.bf16.mxu0 0
  %1313 = vmatpush1.bf16.msra.mxu0 0
  %1314 = vmatprep.subr.bf16.mxu0 0
  %1315 = vmatpush1.bf16.msra.mxu0 0
  %1316 = vmatprep.subr.bf16.mxu0 0
  %1317 = vmatpush1.bf16.msra.mxu0 0
  %1318 = vmatprep.subr.bf16.mxu0 0
  %1319 = vmatpush1.bf16.msra.mxu0 0
  %1320 = vmatprep.subr.bf16.mxu0 0
  %1321 = vmatpush1.bf16.msra.mxu0 0
  %1322 = vmatprep.mubr.bf16.mxu0 0
  %1323 = vmatmul.mubr.bf16.gmra.mrb[0].mxu0 %v983
  %v1324 = vpop.f32.mrb[0].mxu0
  %v1325 = vadd.f32 %v1238, %v1324
  %v1326 = vpop.f32.mrb[0].mxu0
  %v1327 = vpop.f32.mrb[0].mxu0
  %v1328 = vadd.f32 %v1239, %v1327
  %v1329 = vpop.f32.mrb[0].mxu0
  %1330 = vmatprep.mubr.bf16.mxu0 0
  %1331 = vmatmul.mubr.bf16.gmra.mrb[0].mxu0 %v984
  %v1332 = vpop.f32.mrb[0].mxu0
  %v1333 = vadd.f32 %v1240, %v1332
  %v1334 = vpop.f32.mrb[0].mxu0
  %v1335 = vpop.f32.mrb[0].mxu0
  %v1336 = vadd.f32 %v1241, %v1335
  %v1337 = vpop.f32.mrb[0].mxu0
  %1338 = vdwg.mxu0
  %v1339 = vrot.slane %v1216, 1
  %v1340 = vrot.slane %v1219, 1
  %v1341 = vrot.slane %v1224, 1
  %v1342 = vrot.slane %v1227, 1
  %v1343 = vsel %vm735, %v1341, %v1342
  %v1344 = vsel %vm735, %v1340, %v1341
  %v1345 = vsel %vm735, %v1339, %v1340
  %v1346 = vsel %vm735, %v1342, %v1339
  %v1347 = vmul.f32 %v1345, %v362
  %v1348 = vmul.f32 %v1344, %v363
  %v1349 = vmul.f32 %v1343, %v364
  %v1350 = vmul.f32 %v1346, %v365
  %v1351 = vadd.f32 %v1325, %v1347
  %v1352 = vadd.f32 %v1328, %v1348
  %v1353 = vadd.f32 %v1333, %v1349
  %v1354 = vadd.f32 %v1336, %v1350
  %v1355 = vadd.f32 %v1351, %v1352
  %v1356 = vadd.f32 %v1355, %v1353
  %v1357 = vadd.f32 %v1356, %v1354
  %v1358 = vrot.slane %v1357, 4
  %v1359 = vadd.f32 %v1357, %v1358
  %v1360 = vrot.slane %v1359, 2
  %v1361 = vadd.f32 %v1359, %v1360
  %v1362 = vrot.slane %v1361, 1
  %v1363 = vadd.f32 %v1361, %v1362
  %v1364 = vmul.f32 %v1351, %v1351
  %v1365 = vmul.f32 %v1352, %v1352
  %v1366 = vmul.f32 %v1353, %v1353
  %v1367 = vmul.f32 %v1354, %v1354
  %v1368 = vadd.f32 %v1364, %v1365
  %v1369 = vadd.f32 %v1368, %v1366
  %v1370 = vadd.f32 %v1369, %v1367
  %v1371 = vrot.slane %v1370, 4
  %v1372 = vadd.f32 %v1370, %v1371
  %v1373 = vrot.slane %v1372, 2
  %v1374 = vadd.f32 %v1372, %v1373
  %v1375 = vrot.slane %v1374, 1
  %v1376 = vadd.f32 %v1374, %v1375
  %v1377 = vmul.f32 %v368, %v1363
  %v1378 = vmul.f32 %v771, %v1376
  %v1379 = vadd.f32 %v1377, %v1378
  %1380 = vmatprep.subr.mxu0 0.0
  %1381 = vmatpush1.msra.mxu0 %v263
  %1382 = vmatprep.subr.mxu0 0.0
  %1383 = vmatpush1.msra.mxu0 %v264
  %1384 = vmatprep.subr.mxu0 0.0
  %1385 = vmatpush1.msra.mxu0 %v265
  %1386 = vmatprep.subr.mxu0 0.0
  %1387 = vmatpush1.msra.mxu0 %v266
  %1388 = vmatprep.subr.mxu0 0.0
  %1389 = vmatpush1.msra.mxu0 %v267
  %1390 = vmatprep.subr.mxu0 0.0
  %1391 = vmatpush1.msra.mxu0 %v268
  %1392 = vmatprep.subr.mxu0 0.0
  %1393 = vmatpush1.msra.mxu0 %v269
  %1394 = vmatprep.subr.mxu0 0.0
  %1395 = vmatpush1.msra.mxu0 %v270
  %1396 = vmatprep.subr.mxu0 0.0
  %1397 = vmatpush1.msra.mxu0 %v271
  %1398 = vmatprep.subr.mxu0 0.0
  %1399 = vmatpush1.msra.mxu0 %v272
  %1400 = vmatprep.subr.mxu0 0.0
  %1401 = vmatpush1.msra.mxu0 %v273
  %1402 = vmatprep.subr.mxu0 0.0
  %1403 = vmatpush1.msra.mxu0 %v274
  %1404 = vmatprep.subr.mxu0 0.0
  %1405 = vmatpush1.msra.mxu0 %v275
  %1406 = vmatprep.subr.mxu0 0.0
  %1407 = vmatpush1.msra.mxu0 %v276
  %1408 = vmatprep.subr.mxu0 0.0
  %1409 = vmatpush1.msra.mxu0 %v277
  %1410 = vmatprep.subr.mxu0 0.0
  %1411 = vmatpush1.msra.mxu0 %v278
  %1412 = vmatprep.subr.mxu0 0.0
  %1413 = vmatpush1.msra.mxu0 0.0
  %1414 = vmatprep.subr.mxu0 0.0
  %1415 = vmatpush1.msra.mxu0 0.0
  %1416 = vmatprep.subr.mxu0 0.0
  %1417 = vmatpush1.msra.mxu0 0.0
  %1418 = vmatprep.subr.mxu0 0.0
  %1419 = vmatpush1.msra.mxu0 0.0
  %1420 = vmatprep.subr.mxu0 0.0
  %1421 = vmatpush1.msra.mxu0 0.0
  %1422 = vmatprep.subr.mxu0 0.0
  %1423 = vmatpush1.msra.mxu0 0.0
  %1424 = vmatprep.subr.mxu0 0.0
  %1425 = vmatpush1.msra.mxu0 0.0
  %1426 = vmatprep.subr.mxu0 0.0
  %1427 = vmatpush1.msra.mxu0 0.0
  %1428 = vmatprep.subr.mxu0 0.0
  %1429 = vmatpush1.msra.mxu0 0.0
  %1430 = vmatprep.subr.mxu0 0.0
  %1431 = vmatpush1.msra.mxu0 0.0
  %1432 = vmatprep.subr.mxu0 0.0
  %1433 = vmatpush1.msra.mxu0 0.0
  %1434 = vmatprep.subr.mxu0 0.0
  %1435 = vmatpush1.msra.mxu0 0.0
  %1436 = vmatprep.subr.mxu0 0.0
  %1437 = vmatpush1.msra.mxu0 0.0
  %1438 = vmatprep.subr.mxu0 0.0
  %1439 = vmatpush1.msra.mxu0 0.0
  %1440 = vmatprep.subr.mxu0 0.0
  %1441 = vmatpush1.msra.mxu0 0.0
  %1442 = vmatprep.subr.mxu0 0.0
  %1443 = vmatpush1.msra.mxu0 0.0
  %1444 = vmatprep.mubr.f32.mxu0 0.0
  %1445 = vmatmul.mubr.f32.gmra.mrb[0].mxu0 %v1379
  %v1446 = vpop.f32.mrb[0].mxu0
  %v1447 = vadd.f32 0.0, %v1446
  %v1448 = vpop.f32.mrb[0].mxu0
  %1449 = vdwg.mxu0
  %v1450 = vmul.f32 %v1447, 0.001953125
  %v1451 = vmul.f32 %v1450, %v1450
  %v1453 = vrot.slane %v1451, 7
  %v1455 = vsub.f32 %v1450, %v1453
  %v1456 = vadd.f32 %v1455, 1e-05
  %v1457 = vrsqrt.pop %v1456
  %v1459 = vrot.slane %v1457, 7
  %v1461 = vmul.f32 %v369, %v1459
  %v1463 = vrot.slane %v1461, 2
  %v1465 = vmul.f32 %v1450, %v1463
  %v1467 = vrot.slane %v1465, 5
  %v1469 = vsub.f32 %v369, %v1467
  %v1470 = vlaneseq
  %v1471 = vshrl.u32 %v1470, 7
  %v1472 = vsub.s32 2, %v1471
  %v1473 = vrot.slane %v1461, %v1472
  %v1474 = vmul.f32 %v368, %v1473
  %v1475 = vlaneseq
  %v1476 = vshrl.u32 %v1475, 7
  %v1477 = vsub.s32 3, %v1476
  %v1478 = vrot.slane %v1469, %v1477
  %v1479 = vmul.f32 %v771, %v1478
  %v1480 = vadd.f32 %v1474, %v1479
  %v1482 = vsel %vm872, %v1480, 0
  %1484 = vmatprep.subr.mxu0 0.0
  %1485 = vmatpush1.msra.mxu0 %v293
  %1486 = vmatprep.subr.mxu0 0.0
  %1487 = vmatpush1.msra.mxu0 0.0
  %1488 = vmatprep.subr.mxu0 0.0
  %1489 = vmatpush1.msra.mxu0 0.0
  %1490 = vmatprep.subr.mxu0 0.0
  %1491 = vmatpush1.msra.mxu0 0.0
  %1492 = vmatprep.subr.mxu0 0.0
  %1493 = vmatpush1.msra.mxu0 0.0
  %1494 = vmatprep.subr.mxu0 0.0
  %1495 = vmatpush1.msra.mxu0 0.0
  %1496 = vmatprep.subr.mxu0 0.0
  %1497 = vmatpush1.msra.mxu0 0.0
  %1498 = vmatprep.subr.mxu0 0.0
  %1499 = vmatpush1.msra.mxu0 0.0
  %1500 = vmatprep.subr.mxu0 0.0
  %1501 = vmatpush1.msra.mxu0 0.0
  %1502 = vmatprep.subr.mxu0 0.0
  %1503 = vmatpush1.msra.mxu0 0.0
  %1504 = vmatprep.subr.mxu0 0.0
  %1505 = vmatpush1.msra.mxu0 0.0
  %1506 = vmatprep.subr.mxu0 0.0
  %1507 = vmatpush1.msra.mxu0 0.0
  %1508 = vmatprep.subr.mxu0 0.0
  %1509 = vmatpush1.msra.mxu0 0.0
  %1510 = vmatprep.subr.mxu0 0.0
  %1511 = vmatpush1.msra.mxu0 0.0
  %1512 = vmatprep.subr.mxu0 0.0
  %1513 = vmatpush1.msra.mxu0 0.0
  %1514 = vmatprep.subr.mxu0 0.0
  %1515 = vmatpush1.msra.mxu0 0.0
  %1516 = vmatprep.subr.mxu0 0.0
  %1517 = vmatpush1.msra.mxu0 0.0
  %1518 = vmatprep.subr.mxu0 0.0
  %1519 = vmatpush1.msra.mxu0 0.0
  %1520 = vmatprep.subr.mxu0 0.0
  %1521 = vmatpush1.msra.mxu0 0.0
  %1522 = vmatprep.subr.mxu0 0.0
  %1523 = vmatpush1.msra.mxu0 0.0
  %1524 = vmatprep.subr.mxu0 0.0
  %1525 = vmatpush1.msra.mxu0 0.0
  %1526 = vmatprep.subr.mxu0 0.0
  %1527 = vmatpush1.msra.mxu0 0.0
  %1528 = vmatprep.subr.mxu0 0.0
  %1529 = vmatpush1.msra.mxu0 0.0
  %1530 = vmatprep.subr.mxu0 0.0
  %1531 = vmatpush1.msra.mxu0 0.0
  %1532 = vmatprep.subr.mxu0 0.0
  %1533 = vmatpush1.msra.mxu0 0.0
  %1534 = vmatprep.subr.mxu0 0.0
  %1535 = vmatpush1.msra.mxu0 0.0
  %1536 = vmatprep.subr.mxu0 0.0
  %1537 = vmatpush1.msra.mxu0 0.0
  %1538 = vmatprep.subr.mxu0 0.0
  %1539 = vmatpush1.msra.mxu0 0.0
  %1540 = vmatprep.subr.mxu0 0.0
  %1541 = vmatpush1.msra.mxu0 0.0
  %1542 = vmatprep.subr.mxu0 0.0
  %1543 = vmatpush1.msra.mxu0 0.0
  %1544 = vmatprep.subr.mxu0 0.0
  %1545 = vmatpush1.msra.mxu0 0.0
  %1546 = vmatprep.subr.mxu0 0.0
  %1547 = vmatpush1.msra.mxu0 0.0
  %1548 = vmatprep.mubr.f32.mxu0 0.0
  %1549 = vmatmul.mubr.f32.gmra.mrb[0].mxu0 %v1482
  %v1550 = vpop.f32.mrb[0].mxu0
  %v1551 = vadd.f32 0.0, %v1550
  %v1552 = vpop.f32.mrb[0].mxu0
  %1553 = vdwg.mxu0
  %v1554 = vlaneseq
  %v1555 = vshrl.u32 %v1554, 7
  %v1556 = vsub.s32 0, %v1555
  %v1557 = vrot.slane %v1551, %v1556
  %v1558 = vmul.f32 %v1351, %v1557
  %v1559 = vmul.f32 %v1352, %v1557
  %v1560 = vmul.f32 %v1353, %v1557
  %v1561 = vmul.f32 %v1354, %v1557
  %v1562 = vlaneseq
  %v1563 = vshrl.u32 %v1562, 7
  %v1564 = vsub.s32 1, %v1563
  %v1565 = vrot.slane %v1551, %v1564
  %v1566 = vadd.f32 %v1558, %v1565
  %v1567 = vadd.f32 %v1559, %v1565
  %v1568 = vadd.f32 %v1560, %v1565
  %v1569 = vadd.f32 %v1561, %v1565
  %v1570 = vadd.f32 %v371, %v1566
  %v1571 = vadd.f32 %v372, %v1567
  %v1572 = vadd.f32 %v373, %v1568
  %v1573 = vadd.f32 %v374, %v1569
  %1574 = vst [vmem:[%s4] sm:$0xff] %v1570
  %1575 = vst [vmem:[%s4 + $0x8] sm:$0xff] %v1571
  %1576 = vst [vmem:[%s4 + $0x10] sm:$0xff] %v1572
  %1577 = vst [vmem:[%s4 + $0x18] sm:$0xff] %v1573
  // Predicated region
  $region18: #{forward.1} parent=0 // pred_check
    _
  $region19: #{forward.1} parent=0 // pred_check_branch
    %1579 = sbr.rel (0) target = $region21
  $region20: #{forward.1} parent=0 // pred_region
    _
  $region21: #{forward.1} parent=0 // pred_fallthru
    _
  // Predicated region
  $region22: #{forward.1} parent=0 // pred_check
    _
  $region23: #{forward.1} parent=0 // pred_check_branch
    %1581 = sbr.rel (0) target = $region25
  $region24: #{forward.1} parent=0 // pred_region
    _
  $region25: #{forward.1} parent=0 // pred_fallthru
    _

</llo_original>
